<compile_context>
chip_gen: v5e
topology: v5e:2x2
jax: 0.10.0
libtpu: 0.0.40
codegen_flags: <defaults>
</compile_context>

<pallas_src>
import functools
import math

import jax
import jax.numpy as jnp
import numpy as np
from jax import lax
from jax.experimental import pallas as pl
from jax.experimental.pallas import tpu as pltpu

DELTA = 0.001   # self.delta in the PyTorch module
LANE = 128
SUBLANE = 8


def _round_up(x, m):
    return ((x + m - 1) // m) * m


# ----------------------------------------------------------------------------
# Kernel 1: Gabor filter bank, emitted directly in the conv kernel's RHS
# layout (KK, C_pad, O_pad): [t, c, o] = weight[o, c, dy, dx], t = dy*kw + dx.
# Params are tiny (C_pad, O_pad) VMEM tiles; grid coords are SMEM scalars.
# ----------------------------------------------------------------------------
def gabor_weight_kernel(xg_ref, yg_ref, freq_ref, theta_ref, sigma_ref,
                        psi_ref, w_ref, *, num_taps):
    freq = freq_ref[...]
    theta = theta_ref[...]
    sigma = sigma_ref[...]
    psi = psi_ref[...]

    cos_t = jnp.cos(theta)                            # hoisted across taps
    sin_t = jnp.sin(theta)
    inv_sig = 1.0 / ((sigma + DELTA) ** 2)            # hoisted
    norm = 1.0 / (2.0 * math.pi * sigma * sigma)      # hoisted

    for t in range(num_taps):                         # static unroll (kh*kw)
        x = xg_ref[t]                                 # SMEM scalar reads
        y = yg_ref[t]
        rotx = x * cos_t + y * sin_t
        roty = -x * sin_t + y * cos_t
        g = jnp.exp(-0.5 * (rotx * rotx + roty * roty) * inv_sig)
        g = g * jnp.cos(freq * rotx + psi)
        w_ref[t] = g * norm


def compute_gabor_weights(freq, theta, sigma, psi, xg, yg, kh, kw,
                          c_pad, o_pad):
    """Filter bank (KK, C_pad, O_pad), f32.  Padded entries are finite; they
    only ever multiply exactly-zero padded input channels or land in output
    columns that are sliced off."""
    O, C = freq.shape
    KK = kh * kw

    def to_co(p, pad_val):
        p_co = p.T.astype(jnp.float32)                            # (C, O)
        return jnp.pad(p_co, ((0, c_pad - C), (0, o_pad - O)),
                       constant_values=pad_val)

    freq_co = to_co(freq, 1.0)
    theta_co = to_co(theta, 0.0)
    sigma_co = to_co(sigma, 1.0)
    psi_co = to_co(psi, 0.0)
    xg_flat = xg.reshape(-1).astype(jnp.float32)                  # (KK,)
    yg_flat = yg.reshape(-1).astype(jnp.float32)

    smem = pl.BlockSpec(memory_space=pltpu.MemorySpace.SMEM)
    par = pl.BlockSpec((c_pad, o_pad), lambda i: (0, 0))
    return pl.pallas_call(
        functools.partial(gabor_weight_kernel, num_taps=KK),
        out_shape=jax.ShapeDtypeStruct((KK, c_pad, o_pad), jnp.float32),
        grid=(1,),
        in_specs=[smem, smem, par, par, par, par],
        out_specs=pl.BlockSpec((KK, c_pad, o_pad), lambda i: (0, 0, 0)),
    )(xg_flat, yg_flat, freq_co, theta_co, sigma_co, psi_co)


# ----------------------------------------------------------------------------
# Kernel 2: fused im2col + matmul convolution.
#   x_ref : (1, H*W, C_pad)  one image, flattened NHWC, VMEM
#   w_ref : (KK, C_pad, O_pad) filter bank, resident in VMEM across the grid
#   o_ref : (1, L, O_pad) f32, L = (OH-1)*W + OW  (fat rows; cols j >= OW of
#           each fat row block are wrapped garbage, dropped in glue)
# ----------------------------------------------------------------------------
def gabor_conv_kernel(x_ref, w_ref, o_ref, *, kh, kw, W, L):
    acc = jnp.zeros(o_ref.shape[1:], jnp.float32)
    for dy in range(kh):
        for dx in range(kw):
            off = dy * W + dx
            lhs = x_ref[0, off:off + L, :]            # contiguous tap slice
            acc = acc + jnp.dot(lhs, w_ref[dy * kw + dx],
                                preferred_element_type=jnp.float32)
    o_ref[0] = acc


def gabor_conv2d_forward(x, freq, theta, sigma, psi, xg, yg, kh, kw, *,
                         compute_dtype=jnp.bfloat16):
    """GaborConv2d.forward: recompute the filter bank, then stride-1 / VALID /
    no-bias conv.  NCHW in, NCHW out (f32).  Also returns the f32 OIHW weight
    (== conv_layer.weight.data after calculate_weights())."""
    N, C, H, W = x.shape
    O = freq.shape[0]
    KK = kh * kw
    OH, OW = H - kh + 1, W - kw + 1
    L = (OH - 1) * W + OW                    # "fat" output rows per image

    c_pad = _round_up(C, SUBLANE)            # tap-matmul contraction dim
    o_pad = _round_up(O, LANE)               # lane-dense output / RHS columns

    # Filter bank directly in RHS layout; extract module-equivalent weight.
    w_kco = compute_gabor_weights(freq, theta, sigma, psi, xg, yg, kh, kw,
                                  c_pad, o_pad)
    weight_oihw = (w_kco[:, :C, :O].transpose(2, 1, 0)
                   .reshape(O, C, kh, kw))                        # f32

    # NCHW -> flat NHWC (N, H*W, C_pad); channel padding is exactly zero, so
    # the (finite) padded weight rows contribute exactly 0.
    x_flat = jnp.pad(x.transpose(0, 2, 3, 1).astype(jnp.float32),
                     ((0, 0), (0, 0), (0, 0), (0, c_pad - C)))
    x_flat = x_flat.reshape(N, H * W, c_pad).astype(compute_dtype)
    w_rhs = w_kco.astype(compute_dtype)

    # VMEM budget (v7x has only 64 MiB VMEM / 32 MiB scoped default).
    itm = jnp.dtype(compute_dtype).itemsize
    working = (2 * H * W * c_pad * itm            # double-buffered input slab
               + 2 * L * o_pad * 4                # double-buffered f32 output
               + KK * c_pad * o_pad * itm)        # resident filter bank
    vmem_limit = int(min(96 * 2**20, max(16 * 2**20, 2 * working)))

    # TODO(synk): for large images, tile over OH with a manually-DMA'd
    # overlapping row slab (memory_space=pl.ANY) instead of one whole image
    # per grid step.
    out_fat = pl.pallas_call(
        functools.partial(gabor_conv_kernel, kh=kh, kw=kw, W=W, L=L),
        out_shape=jax.ShapeDtypeStruct((N, L, o_pad), jnp.float32),
        grid=(N,),
        in_specs=[
            pl.BlockSpec((1, H * W, c_pad), lambda n: (n, 0, 0)),
            pl.BlockSpec((KK, c_pad, o_pad), lambda n: (0, 0, 0)),  # resident
        ],
        out_specs=pl.BlockSpec((1, L, o_pad), lambda n: (n, 0, 0)),
        compiler_params=pltpu.CompilerParams(
            dimension_semantics=("parallel",),
            vmem_limit_bytes=vmem_limit),
    )(x_flat, w_rhs)

    # Un-fatten: fat row m = i*W + j is valid only for j < OW.  Drop wrapped
    # columns and padded out-channels, restore NCHW (PyTorch semantics).
    # TODO(synk): keep the lane-dense NHWC layout if downstream allows, to
    # save this extra transpose round-trip of the output.
    out = jnp.pad(out_fat, ((0, 0), (0, OH * W - L), (0, 0)))
    out = out.reshape(N, OH, W, o_pad)[:, :, :OW, :O].transpose(0, 3, 1, 2)
    return out, weight_oihw


if __name__ == "__main__":
    # Module config (GaborConv2d defaults: stride=1, padding=0, dilation=1,
    # groups=1, bias=False).
    in_channels, out_channels = 4, 8
    kh = kw = 3
    N, H, W = 2, 16, 16

    key = jax.random.PRNGKey(0)
    k_freq, k_theta, k_psi, k_x = jax.random.split(key, 4)

    # Deterministic parameter init mirroring __init__.
    freq = (math.pi / 2.0) * (math.sqrt(2.0) **
            (-jax.random.randint(k_freq, (out_channels, in_channels), 0, 5)
             ).astype(jnp.float32))
    theta = (math.pi / 8.0) * jax.random.randint(
        k_theta, (out_channels, in_channels), 0, 8).astype(jnp.float32)
    sigma = math.pi / freq
    psi = math.pi * jax.random.uniform(k_psi, (out_channels, in_channels),
                                       dtype=jnp.float32)

    # Meshgrid exactly as in the module ('ij' indexing, torch default).
    x0 = float(math.ceil(kh / 2))
    y0 = float(math.ceil(kw / 2))
    yg, xg = jnp.meshgrid(jnp.linspace(-x0 + 1, x0 + 0, kh),
                          jnp.linspace(-y0 + 1, y0 + 0, kw),
                          indexing="ij")
    yg = yg.astype(jnp.float32)
    xg = xg.astype(jnp.float32)

    x_in = jax.random.normal(k_x, (N, in_channels, H, W), dtype=jnp.float32)

    out, weight = gabor_conv2d_forward(x_in, freq, theta, sigma, psi,
                                       xg, yg, kh, kw,
                                       compute_dtype=jnp.bfloat16)
    out = jax.block_until_ready(out)

    # Reference: XLA conv with the same generated f32 weight (same NCHW/OIHW
    # semantics as the PyTorch conv_layer).  Tolerance loosened because the
    # Pallas kernel uses bf16 matmul operands with f32 accumulation.
    ref = lax.conv_general_dilated(
        x_in, weight, window_strides=(1, 1), padding="VALID",
        dimension_numbers=("NCHW", "OIHW", "NCHW"))
    ref = jax.block_until_ready(ref)

    assert out.shape == (N, out_channels, H - kh + 1, W - kw + 1)
    np.testing.assert_allclose(np.asarray(out), np.asarray(ref),
                               rtol=2e-2, atol=1e-2)
    print("KERNEL_OK")
</pallas_src>

<mosaic_0001>
module attributes {stable_mosaic.version = 11 : i64} {
  func.func @gabor_weight_kernel(%arg0: i32, %arg1: memref<9xf32, #tpu.memory_space<smem>>, %arg2: memref<9xf32, #tpu.memory_space<smem>>, %arg3: memref<8x128xf32, #tpu.memory_space<vmem>>, %arg4: memref<8x128xf32, #tpu.memory_space<vmem>>, %arg5: memref<8x128xf32, #tpu.memory_space<vmem>>, %arg6: memref<8x128xf32, #tpu.memory_space<vmem>>, %arg7: memref<9x8x128xf32, #tpu.memory_space<vmem>>) attributes {dimension_semantics = [#tpu.dimension_semantics<arbitrary>], iteration_bounds = array<i64: 1>, scalar_prefetch = 0 : i64, scratch_operands = 0 : i64, tpu.core_type = #tpu.core_type<tc>, window_params = [{transform_indices = @transform_0, window_bounds = array<i64: 9>}, {transform_indices = @transform_1, window_bounds = array<i64: 9>}, {pipeline_mode = #tpu.pipeline_mode<synchronous>, transform_indices = @transform_2, window_bounds = array<i64: 8, 128>}, {pipeline_mode = #tpu.pipeline_mode<synchronous>, transform_indices = @transform_3, window_bounds = array<i64: 8, 128>}, {pipeline_mode = #tpu.pipeline_mode<synchronous>, transform_indices = @transform_4, window_bounds = array<i64: 8, 128>}, {pipeline_mode = #tpu.pipeline_mode<synchronous>, transform_indices = @transform_5, window_bounds = array<i64: 8, 128>}, {pipeline_mode = #tpu.pipeline_mode<synchronous>, transform_indices = @transform_6, window_bounds = array<i64: 9, 8, 128>}]} {
    %c0 = arith.constant 0 : index
    %c0_0 = arith.constant 0 : index
    %0 = vector.load %arg3[%c0, %c0_0] : memref<8x128xf32, #tpu.memory_space<vmem>>, vector<8x128xf32>
    %c0_1 = arith.constant 0 : index
    %c0_2 = arith.constant 0 : index
    %1 = vector.load %arg4[%c0_1, %c0_2] : memref<8x128xf32, #tpu.memory_space<vmem>>, vector<8x128xf32>
    %c0_3 = arith.constant 0 : index
    %c0_4 = arith.constant 0 : index
    %2 = vector.load %arg5[%c0_3, %c0_4] : memref<8x128xf32, #tpu.memory_space<vmem>>, vector<8x128xf32>
    %c0_5 = arith.constant 0 : index
    %c0_6 = arith.constant 0 : index
    %3 = vector.load %arg6[%c0_5, %c0_6] : memref<8x128xf32, #tpu.memory_space<vmem>>, vector<8x128xf32>
    %4 = math.cos %1 : vector<8x128xf32>
    %5 = math.sin %1 : vector<8x128xf32>
    %cst = arith.constant 1.000000e-03 : f32
    %6 = vector.broadcast %cst : f32 to vector<8x128xf32>
    %7 = arith.addf %2, %6 : vector<8x128xf32>
    %8 = arith.mulf %7, %7 : vector<8x128xf32>
    %cst_7 = arith.constant 1.000000e+00 : f32
    %9 = vector.broadcast %cst_7 : f32 to vector<8x128xf32>
    %10 = arith.divf %9, %8 : vector<8x128xf32>
    %cst_8 = arith.constant 6.28318548 : f32
    %11 = vector.broadcast %cst_8 : f32 to vector<8x128xf32>
    %12 = arith.mulf %11, %2 : vector<8x128xf32>
    %13 = arith.mulf %12, %2 : vector<8x128xf32>
    %cst_9 = arith.constant 1.000000e+00 : f32
    %14 = vector.broadcast %cst_9 : f32 to vector<8x128xf32>
    %15 = arith.divf %14, %13 : vector<8x128xf32>
    %c0_10 = arith.constant 0 : index
    %16 = memref.load %arg1[%c0_10] : memref<9xf32, #tpu.memory_space<smem>>
    %c0_11 = arith.constant 0 : index
    %17 = memref.load %arg2[%c0_11] : memref<9xf32, #tpu.memory_space<smem>>
    %18 = vector.broadcast %16 : f32 to vector<8x128xf32>
    %19 = arith.mulf %18, %4 : vector<8x128xf32>
    %20 = vector.broadcast %17 : f32 to vector<8x128xf32>
    %21 = arith.mulf %20, %5 : vector<8x128xf32>
    %22 = arith.addf %19, %21 : vector<8x128xf32>
    %cst_12 = arith.constant 0.000000e+00 : f32
    %23 = arith.subf %cst_12, %16 : f32
    %24 = vector.broadcast %23 : f32 to vector<8x128xf32>
    %25 = arith.mulf %24, %5 : vector<8x128xf32>
    %26 = vector.broadcast %17 : f32 to vector<8x128xf32>
    %27 = arith.mulf %26, %4 : vector<8x128xf32>
    %28 = arith.addf %25, %27 : vector<8x128xf32>
    %29 = arith.mulf %22, %22 : vector<8x128xf32>
    %30 = arith.mulf %28, %28 : vector<8x128xf32>
    %31 = arith.addf %29, %30 : vector<8x128xf32>
    %cst_13 = arith.constant -5.000000e-01 : f32
    %32 = vector.broadcast %cst_13 : f32 to vector<8x128xf32>
    %33 = arith.mulf %32, %31 : vector<8x128xf32>
    %34 = arith.mulf %33, %10 : vector<8x128xf32>
    %35 = math.exp %34 : vector<8x128xf32>
    %36 = arith.mulf %0, %22 : vector<8x128xf32>
    %37 = arith.addf %36, %3 : vector<8x128xf32>
    %38 = math.cos %37 : vector<8x128xf32>
    %39 = arith.mulf %35, %38 : vector<8x128xf32>
    %40 = arith.mulf %39, %15 : vector<8x128xf32>
    %c0_14 = arith.constant 0 : index
    %c0_15 = arith.constant 0 : index
    %c0_16 = arith.constant 0 : index
    %41 = vector.load %arg7[%c0_14, %c0_15, %c0_16] : memref<9x8x128xf32, #tpu.memory_space<vmem>>, vector<1x8x128xf32>
    %42 = vector.shape_cast %41 : vector<1x8x128xf32> to vector<8x128xf32>
    %43 = vector.shape_cast %40 : vector<8x128xf32> to vector<1x8x128xf32>
    tpu.vector_store %arg7[%c0_14, %c0_15, %c0_16], %43 {strides = array<i32>} : memref<9x8x128xf32, #tpu.memory_space<vmem>>, vector<1x8x128xf32>,
    %c1 = arith.constant 1 : index
    %44 = memref.load %arg1[%c1] : memref<9xf32, #tpu.memory_space<smem>>
    %c1_17 = arith.constant 1 : index
    %45 = memref.load %arg2[%c1_17] : memref<9xf32, #tpu.memory_space<smem>>
    %46 = vector.broadcast %44 : f32 to vector<8x128xf32>
    %47 = arith.mulf %46, %4 : vector<8x128xf32>
    %48 = vector.broadcast %45 : f32 to vector<8x128xf32>
    %49 = arith.mulf %48, %5 : vector<8x128xf32>
    %50 = arith.addf %47, %49 : vector<8x128xf32>
    %cst_18 = arith.constant 0.000000e+00 : f32
    %51 = arith.subf %cst_18, %44 : f32
    %52 = vector.broadcast %51 : f32 to vector<8x128xf32>
    %53 = arith.mulf %52, %5 : vector<8x128xf32>
    %54 = vector.broadcast %45 : f32 to vector<8x128xf32>
    %55 = arith.mulf %54, %4 : vector<8x128xf32>
    %56 = arith.addf %53, %55 : vector<8x128xf32>
    %57 = arith.mulf %50, %50 : vector<8x128xf32>
    %58 = arith.mulf %56, %56 : vector<8x128xf32>
    %59 = arith.addf %57, %58 : vector<8x128xf32>
    %cst_19 = arith.constant -5.000000e-01 : f32
    %60 = vector.broadcast %cst_19 : f32 to vector<8x128xf32>
    %61 = arith.mulf %60, %59 : vector<8x128xf32>
    %62 = arith.mulf %61, %10 : vector<8x128xf32>
    %63 = math.exp %62 : vector<8x128xf32>
    %64 = arith.mulf %0, %50 : vector<8x128xf32>
    %65 = arith.addf %64, %3 : vector<8x128xf32>
    %66 = math.cos %65 : vector<8x128xf32>
    %67 = arith.mulf %63, %66 : vector<8x128xf32>
    %68 = arith.mulf %67, %15 : vector<8x128xf32>
    %c1_20 = arith.constant 1 : index
    %c0_21 = arith.constant 0 : index
    %c0_22 = arith.constant 0 : index
    %69 = vector.load %arg7[%c1_20, %c0_21, %c0_22] : memref<9x8x128xf32, #tpu.memory_space<vmem>>, vector<1x8x128xf32>
    %70 = vector.shape_cast %69 : vector<1x8x128xf32> to vector<8x128xf32>
    %71 = vector.shape_cast %68 : vector<8x128xf32> to vector<1x8x128xf32>
    tpu.vector_store %arg7[%c1_20, %c0_21, %c0_22], %71 {strides = array<i32>} : memref<9x8x128xf32, #tpu.memory_space<vmem>>, vector<1x8x128xf32>,
    %c2 = arith.constant 2 : index
    %72 = memref.load %arg1[%c2] : memref<9xf32, #tpu.memory_space<smem>>
    %c2_23 = arith.constant 2 : index
    %73 = memref.load %arg2[%c2_23] : memref<9xf32, #tpu.memory_space<smem>>
    %74 = vector.broadcast %72 : f32 to vector<8x128xf32>
    %75 = arith.mulf %74, %4 : vector<8x128xf32>
    %76 = vector.broadcast %73 : f32 to vector<8x128xf32>
    %77 = arith.mulf %76, %5 : vector<8x128xf32>
    %78 = arith.addf %75, %77 : vector<8x128xf32>
    %cst_24 = arith.constant 0.000000e+00 : f32
    %79 = arith.subf %cst_24, %72 : f32
    %80 = vector.broadcast %79 : f32 to vector<8x128xf32>
    %81 = arith.mulf %80, %5 : vector<8x128xf32>
    %82 = vector.broadcast %73 : f32 to vector<8x128xf32>
    %83 = arith.mulf %82, %4 : vector<8x128xf32>
    %84 = arith.addf %81, %83 : vector<8x128xf32>
    %85 = arith.mulf %78, %78 : vector<8x128xf32>
    %86 = arith.mulf %84, %84 : vector<8x128xf32>
    %87 = arith.addf %85, %86 : vector<8x128xf32>
    %cst_25 = arith.constant -5.000000e-01 : f32
    %88 = vector.broadcast %cst_25 : f32 to vector<8x128xf32>
    %89 = arith.mulf %88, %87 : vector<8x128xf32>
    %90 = arith.mulf %89, %10 : vector<8x128xf32>
    %91 = math.exp %90 : vector<8x128xf32>
    %92 = arith.mulf %0, %78 : vector<8x128xf32>
    %93 = arith.addf %92, %3 : vector<8x128xf32>
    %94 = math.cos %93 : vector<8x128xf32>
    %95 = arith.mulf %91, %94 : vector<8x128xf32>
    %96 = arith.mulf %95, %15 : vector<8x128xf32>
    %c2_26 = arith.constant 2 : index
    %c0_27 = arith.constant 0 : index
    %c0_28 = arith.constant 0 : index
    %97 = vector.load %arg7[%c2_26, %c0_27, %c0_28] : memref<9x8x128xf32, #tpu.memory_space<vmem>>, vector<1x8x128xf32>
    %98 = vector.shape_cast %97 : vector<1x8x128xf32> to vector<8x128xf32>
    %99 = vector.shape_cast %96 : vector<8x128xf32> to vector<1x8x128xf32>
    tpu.vector_store %arg7[%c2_26, %c0_27, %c0_28], %99 {strides = array<i32>} : memref<9x8x128xf32, #tpu.memory_space<vmem>>, vector<1x8x128xf32>,
    %c3 = arith.constant 3 : index
    %100 = memref.load %arg1[%c3] : memref<9xf32, #tpu.memory_space<smem>>
    %c3_29 = arith.constant 3 : index
    %101 = memref.load %arg2[%c3_29] : memref<9xf32, #tpu.memory_space<smem>>
    %102 = vector.broadcast %100 : f32 to vector<8x128xf32>
    %103 = arith.mulf %102, %4 : vector<8x128xf32>
    %104 = vector.broadcast %101 : f32 to vector<8x128xf32>
    %105 = arith.mulf %104, %5 : vector<8x128xf32>
    %106 = arith.addf %103, %105 : vector<8x128xf32>
    %cst_30 = arith.constant 0.000000e+00 : f32
    %107 = arith.subf %cst_30, %100 : f32
    %108 = vector.broadcast %107 : f32 to vector<8x128xf32>
    %109 = arith.mulf %108, %5 : vector<8x128xf32>
    %110 = vector.broadcast %101 : f32 to vector<8x128xf32>
    %111 = arith.mulf %110, %4 : vector<8x128xf32>
    %112 = arith.addf %109, %111 : vector<8x128xf32>
    %113 = arith.mulf %106, %106 : vector<8x128xf32>
    %114 = arith.mulf %112, %112 : vector<8x128xf32>
    %115 = arith.addf %113, %114 : vector<8x128xf32>
    %cst_31 = arith.constant -5.000000e-01 : f32
    %116 = vector.broadcast %cst_31 : f32 to vector<8x128xf32>
    %117 = arith.mulf %116, %115 : vector<8x128xf32>
    %118 = arith.mulf %117, %10 : vector<8x128xf32>
    %119 = math.exp %118 : vector<8x128xf32>
    %120 = arith.mulf %0, %106 : vector<8x128xf32>
    %121 = arith.addf %120, %3 : vector<8x128xf32>
    %122 = math.cos %121 : vector<8x128xf32>
    %123 = arith.mulf %119, %122 : vector<8x128xf32>
    %124 = arith.mulf %123, %15 : vector<8x128xf32>
    %c3_32 = arith.constant 3 : index
    %c0_33 = arith.constant 0 : index
    %c0_34 = arith.constant 0 : index
    %125 = vector.load %arg7[%c3_32, %c0_33, %c0_34] : memref<9x8x128xf32, #tpu.memory_space<vmem>>, vector<1x8x128xf32>
    %126 = vector.shape_cast %125 : vector<1x8x128xf32> to vector<8x128xf32>
    %127 = vector.shape_cast %124 : vector<8x128xf32> to vector<1x8x128xf32>
    tpu.vector_store %arg7[%c3_32, %c0_33, %c0_34], %127 {strides = array<i32>} : memref<9x8x128xf32, #tpu.memory_space<vmem>>, vector<1x8x128xf32>,
    %c4 = arith.constant 4 : index
    %128 = memref.load %arg1[%c4] : memref<9xf32, #tpu.memory_space<smem>>
    %c4_35 = arith.constant 4 : index
    %129 = memref.load %arg2[%c4_35] : memref<9xf32, #tpu.memory_space<smem>>
    %130 = vector.broadcast %128 : f32 to vector<8x128xf32>
    %131 = arith.mulf %130, %4 : vector<8x128xf32>
    %132 = vector.broadcast %129 : f32 to vector<8x128xf32>
    %133 = arith.mulf %132, %5 : vector<8x128xf32>
    %134 = arith.addf %131, %133 : vector<8x128xf32>
    %cst_36 = arith.constant 0.000000e+00 : f32
    %135 = arith.subf %cst_36, %128 : f32
    %136 = vector.broadcast %135 : f32 to vector<8x128xf32>
    %137 = arith.mulf %136, %5 : vector<8x128xf32>
    %138 = vector.broadcast %129 : f32 to vector<8x128xf32>
    %139 = arith.mulf %138, %4 : vector<8x128xf32>
    %140 = arith.addf %137, %139 : vector<8x128xf32>
    %141 = arith.mulf %134, %134 : vector<8x128xf32>
    %142 = arith.mulf %140, %140 : vector<8x128xf32>
    %143 = arith.addf %141, %142 : vector<8x128xf32>
    %cst_37 = arith.constant -5.000000e-01 : f32
    %144 = vector.broadcast %cst_37 : f32 to vector<8x128xf32>
    %145 = arith.mulf %144, %143 : vector<8x128xf32>
    %146 = arith.mulf %145, %10 : vector<8x128xf32>
    %147 = math.exp %146 : vector<8x128xf32>
    %148 = arith.mulf %0, %134 : vector<8x128xf32>
    %149 = arith.addf %148, %3 : vector<8x128xf32>
    %150 = math.cos %149 : vector<8x128xf32>
    %151 = arith.mulf %147, %150 : vector<8x128xf32>
    %152 = arith.mulf %151, %15 : vector<8x128xf32>
    %c4_38 = arith.constant 4 : index
    %c0_39 = arith.constant 0 : index
    %c0_40 = arith.constant 0 : index
    %153 = vector.load %arg7[%c4_38, %c0_39, %c0_40] : memref<9x8x128xf32, #tpu.memory_space<vmem>>, vector<1x8x128xf32>
    %154 = vector.shape_cast %153 : vector<1x8x128xf32> to vector<8x128xf32>
    %155 = vector.shape_cast %152 : vector<8x128xf32> to vector<1x8x128xf32>
    tpu.vector_store %arg7[%c4_38, %c0_39, %c0_40], %155 {strides = array<i32>} : memref<9x8x128xf32, #tpu.memory_space<vmem>>, vector<1x8x128xf32>,
    %c5 = arith.constant 5 : index
    %156 = memref.load %arg1[%c5] : memref<9xf32, #tpu.memory_space<smem>>
    %c5_41 = arith.constant 5 : index
    %157 = memref.load %arg2[%c5_41] : memref<9xf32, #tpu.memory_space<smem>>
    %158 = vector.broadcast %156 : f32 to vector<8x128xf32>
    %159 = arith.mulf %158, %4 : vector<8x128xf32>
    %160 = vector.broadcast %157 : f32 to vector<8x128xf32>
    %161 = arith.mulf %160, %5 : vector<8x128xf32>
    %162 = arith.addf %159, %161 : vector<8x128xf32>
    %cst_42 = arith.constant 0.000000e+00 : f32
    %163 = arith.subf %cst_42, %156 : f32
    %164 = vector.broadcast %163 : f32 to vector<8x128xf32>
    %165 = arith.mulf %164, %5 : vector<8x128xf32>
    %166 = vector.broadcast %157 : f32 to vector<8x128xf32>
    %167 = arith.mulf %166, %4 : vector<8x128xf32>
    %168 = arith.addf %165, %167 : vector<8x128xf32>
    %169 = arith.mulf %162, %162 : vector<8x128xf32>
    %170 = arith.mulf %168, %168 : vector<8x128xf32>
    %171 = arith.addf %169, %170 : vector<8x128xf32>
    %cst_43 = arith.constant -5.000000e-01 : f32
    %172 = vector.broadcast %cst_43 : f32 to vector<8x128xf32>
    %173 = arith.mulf %172, %171 : vector<8x128xf32>
    %174 = arith.mulf %173, %10 : vector<8x128xf32>
    %175 = math.exp %174 : vector<8x128xf32>
    %176 = arith.mulf %0, %162 : vector<8x128xf32>
    %177 = arith.addf %176, %3 : vector<8x128xf32>
    %178 = math.cos %177 : vector<8x128xf32>
    %179 = arith.mulf %175, %178 : vector<8x128xf32>
    %180 = arith.mulf %179, %15 : vector<8x128xf32>
    %c5_44 = arith.constant 5 : index
    %c0_45 = arith.constant 0 : index
    %c0_46 = arith.constant 0 : index
    %181 = vector.load %arg7[%c5_44, %c0_45, %c0_46] : memref<9x8x128xf32, #tpu.memory_space<vmem>>, vector<1x8x128xf32>
    %182 = vector.shape_cast %181 : vector<1x8x128xf32> to vector<8x128xf32>
    %183 = vector.shape_cast %180 : vector<8x128xf32> to vector<1x8x128xf32>
    tpu.vector_store %arg7[%c5_44, %c0_45, %c0_46], %183 {strides = array<i32>} : memref<9x8x128xf32, #tpu.memory_space<vmem>>, vector<1x8x128xf32>,
    %c6 = arith.constant 6 : index
    %184 = memref.load %arg1[%c6] : memref<9xf32, #tpu.memory_space<smem>>
    %c6_47 = arith.constant 6 : index
    %185 = memref.load %arg2[%c6_47] : memref<9xf32, #tpu.memory_space<smem>>
    %186 = vector.broadcast %184 : f32 to vector<8x128xf32>
    %187 = arith.mulf %186, %4 : vector<8x128xf32>
    %188 = vector.broadcast %185 : f32 to vector<8x128xf32>
    %189 = arith.mulf %188, %5 : vector<8x128xf32>
    %190 = arith.addf %187, %189 : vector<8x128xf32>
    %cst_48 = arith.constant 0.000000e+00 : f32
    %191 = arith.subf %cst_48, %184 : f32
    %192 = vector.broadcast %191 : f32 to vector<8x128xf32>
    %193 = arith.mulf %192, %5 : vector<8x128xf32>
    %194 = vector.broadcast %185 : f32 to vector<8x128xf32>
    %195 = arith.mulf %194, %4 : vector<8x128xf32>
    %196 = arith.addf %193, %195 : vector<8x128xf32>
    %197 = arith.mulf %190, %190 : vector<8x128xf32>
    %198 = arith.mulf %196, %196 : vector<8x128xf32>
    %199 = arith.addf %197, %198 : vector<8x128xf32>
    %cst_49 = arith.constant -5.000000e-01 : f32
    %200 = vector.broadcast %cst_49 : f32 to vector<8x128xf32>
    %201 = arith.mulf %200, %199 : vector<8x128xf32>
    %202 = arith.mulf %201, %10 : vector<8x128xf32>
    %203 = math.exp %202 : vector<8x128xf32>
    %204 = arith.mulf %0, %190 : vector<8x128xf32>
    %205 = arith.addf %204, %3 : vector<8x128xf32>
    %206 = math.cos %205 : vector<8x128xf32>
    %207 = arith.mulf %203, %206 : vector<8x128xf32>
    %208 = arith.mulf %207, %15 : vector<8x128xf32>
    %c6_50 = arith.constant 6 : index
    %c0_51 = arith.constant 0 : index
    %c0_52 = arith.constant 0 : index
    %209 = vector.load %arg7[%c6_50, %c0_51, %c0_52] : memref<9x8x128xf32, #tpu.memory_space<vmem>>, vector<1x8x128xf32>
    %210 = vector.shape_cast %209 : vector<1x8x128xf32> to vector<8x128xf32>
    %211 = vector.shape_cast %208 : vector<8x128xf32> to vector<1x8x128xf32>
    tpu.vector_store %arg7[%c6_50, %c0_51, %c0_52], %211 {strides = array<i32>} : memref<9x8x128xf32, #tpu.memory_space<vmem>>, vector<1x8x128xf32>,
    %c7 = arith.constant 7 : index
    %212 = memref.load %arg1[%c7] : memref<9xf32, #tpu.memory_space<smem>>
    %c7_53 = arith.constant 7 : index
    %213 = memref.load %arg2[%c7_53] : memref<9xf32, #tpu.memory_space<smem>>
    %214 = vector.broadcast %212 : f32 to vector<8x128xf32>
    %215 = arith.mulf %214, %4 : vector<8x128xf32>
    %216 = vector.broadcast %213 : f32 to vector<8x128xf32>
    %217 = arith.mulf %216, %5 : vector<8x128xf32>
    %218 = arith.addf %215, %217 : vector<8x128xf32>
    %cst_54 = arith.constant 0.000000e+00 : f32
    %219 = arith.subf %cst_54, %212 : f32
    %220 = vector.broadcast %219 : f32 to vector<8x128xf32>
    %221 = arith.mulf %220, %5 : vector<8x128xf32>
    %222 = vector.broadcast %213 : f32 to vector<8x128xf32>
    %223 = arith.mulf %222, %4 : vector<8x128xf32>
    %224 = arith.addf %221, %223 : vector<8x128xf32>
    %225 = arith.mulf %218, %218 : vector<8x128xf32>
    %226 = arith.mulf %224, %224 : vector<8x128xf32>
    %227 = arith.addf %225, %226 : vector<8x128xf32>
    %cst_55 = arith.constant -5.000000e-01 : f32
    %228 = vector.broadcast %cst_55 : f32 to vector<8x128xf32>
    %229 = arith.mulf %228, %227 : vector<8x128xf32>
    %230 = arith.mulf %229, %10 : vector<8x128xf32>
    %231 = math.exp %230 : vector<8x128xf32>
    %232 = arith.mulf %0, %218 : vector<8x128xf32>
    %233 = arith.addf %232, %3 : vector<8x128xf32>
    %234 = math.cos %233 : vector<8x128xf32>
    %235 = arith.mulf %231, %234 : vector<8x128xf32>
    %236 = arith.mulf %235, %15 : vector<8x128xf32>
    %c7_56 = arith.constant 7 : index
    %c0_57 = arith.constant 0 : index
    %c0_58 = arith.constant 0 : index
    %237 = vector.load %arg7[%c7_56, %c0_57, %c0_58] : memref<9x8x128xf32, #tpu.memory_space<vmem>>, vector<1x8x128xf32>
    %238 = vector.shape_cast %237 : vector<1x8x128xf32> to vector<8x128xf32>
    %239 = vector.shape_cast %236 : vector<8x128xf32> to vector<1x8x128xf32>
    tpu.vector_store %arg7[%c7_56, %c0_57, %c0_58], %239 {strides = array<i32>} : memref<9x8x128xf32, #tpu.memory_space<vmem>>, vector<1x8x128xf32>,
    %c8 = arith.constant 8 : index
    %240 = memref.load %arg1[%c8] : memref<9xf32, #tpu.memory_space<smem>>
    %c8_59 = arith.constant 8 : index
    %241 = memref.load %arg2[%c8_59] : memref<9xf32, #tpu.memory_space<smem>>
    %242 = vector.broadcast %240 : f32 to vector<8x128xf32>
    %243 = arith.mulf %242, %4 : vector<8x128xf32>
    %244 = vector.broadcast %241 : f32 to vector<8x128xf32>
    %245 = arith.mulf %244, %5 : vector<8x128xf32>
    %246 = arith.addf %243, %245 : vector<8x128xf32>
    %cst_60 = arith.constant 0.000000e+00 : f32
    %247 = arith.subf %cst_60, %240 : f32
    %248 = vector.broadcast %247 : f32 to vector<8x128xf32>
    %249 = arith.mulf %248, %5 : vector<8x128xf32>
    %250 = vector.broadcast %241 : f32 to vector<8x128xf32>
    %251 = arith.mulf %250, %4 : vector<8x128xf32>
    %252 = arith.addf %249, %251 : vector<8x128xf32>
    %253 = arith.mulf %246, %246 : vector<8x128xf32>
    %254 = arith.mulf %252, %252 : vector<8x128xf32>
    %255 = arith.addf %253, %254 : vector<8x128xf32>
    %cst_61 = arith.constant -5.000000e-01 : f32
    %256 = vector.broadcast %cst_61 : f32 to vector<8x128xf32>
    %257 = arith.mulf %256, %255 : vector<8x128xf32>
    %258 = arith.mulf %257, %10 : vector<8x128xf32>
    %259 = math.exp %258 : vector<8x128xf32>
    %260 = arith.mulf %0, %246 : vector<8x128xf32>
    %261 = arith.addf %260, %3 : vector<8x128xf32>
    %262 = math.cos %261 : vector<8x128xf32>
    %263 = arith.mulf %259, %262 : vector<8x128xf32>
    %264 = arith.mulf %263, %15 : vector<8x128xf32>
    %c8_62 = arith.constant 8 : index
    %c0_63 = arith.constant 0 : index
    %c0_64 = arith.constant 0 : index
    %265 = vector.load %arg7[%c8_62, %c0_63, %c0_64] : memref<9x8x128xf32, #tpu.memory_space<vmem>>, vector<1x8x128xf32>
    %266 = vector.shape_cast %265 : vector<1x8x128xf32> to vector<8x128xf32>
    %267 = vector.shape_cast %264 : vector<8x128xf32> to vector<1x8x128xf32>
    tpu.vector_store %arg7[%c8_62, %c0_63, %c0_64], %267 {strides = array<i32>} : memref<9x8x128xf32, #tpu.memory_space<vmem>>, vector<1x8x128xf32>,
    return
  }
  func.func @transform_0(%arg0: i32) -> i32 {
    %c0_i32 = arith.constant 0 : i32
    %c0_i32_0 = arith.constant 0 : i32
    return %c0_i32 : i32
  }
  func.func @transform_1(%arg0: i32) -> i32 {
    %c0_i32 = arith.constant 0 : i32
    %c0_i32_0 = arith.constant 0 : i32
    return %c0_i32 : i32
  }
  func.func @transform_2(%arg0: i32) -> (i32, i32) {
    %c0_i32 = arith.constant 0 : i32
    %c0_i32_0 = arith.constant 0 : i32
    %c0_i32_1 = arith.constant 0 : i32
    return %c0_i32, %c0_i32_0 : i32, i32
  }
  func.func @transform_3(%arg0: i32) -> (i32, i32) {
    %c0_i32 = arith.constant 0 : i32
    %c0_i32_0 = arith.constant 0 : i32
    %c0_i32_1 = arith.constant 0 : i32
    return %c0_i32, %c0_i32_0 : i32, i32
  }
  func.func @transform_4(%arg0: i32) -> (i32, i32) {
    %c0_i32 = arith.constant 0 : i32
    %c0_i32_0 = arith.constant 0 : i32
    %c0_i32_1 = arith.constant 0 : i32
    return %c0_i32, %c0_i32_0 : i32, i32
  }
  func.func @transform_5(%arg0: i32) -> (i32, i32) {
    %c0_i32 = arith.constant 0 : i32
    %c0_i32_0 = arith.constant 0 : i32
    %c0_i32_1 = arith.constant 0 : i32
    return %c0_i32, %c0_i32_0 : i32, i32
  }
  func.func @transform_6(%arg0: i32) -> (i32, i32, i32) {
    %c0_i32 = arith.constant 0 : i32
    %c0_i32_0 = arith.constant 0 : i32
    %c0_i32_1 = arith.constant 0 : i32
    %c0_i32_2 = arith.constant 0 : i32
    return %c0_i32, %c0_i32_0, %c0_i32_1 : i32, i32, i32
  }
}

</mosaic_0001>

<llo_original>
// kernel: tpu_custom_call.1
$region0: #{tpu_custom_call.1}
  #allocation0 [shape = 'u32[]', space=smem, size = 0x4, offset = 0x4, fixed_abs, tag = 'smem constant byte address 0x4 - core index']
  #allocation1 [shape = 'u32[72,128]{1,0:T(1,128)}', space=vmem, size = 0x9000, scoped, tag = 'internal scratch']
  %s0 = inlined_call_operand.hbm [shape: f32[9], index: 0, kind: input, shape index: {}]
  %s1 = inlined_call_operand.hbm [shape: f32[9], index: 1, kind: input, shape index: {}]
  %s2 = inlined_call_operand.hbm [shape: f32[8,128], index: 2, kind: input, shape index: {}]
  %s3 = inlined_call_operand.hbm [shape: f32[8,128], index: 3, kind: input, shape index: {}]
  %s4 = inlined_call_operand.hbm [shape: f32[8,128], index: 4, kind: input, shape index: {}]
  %s5 = inlined_call_operand.hbm [shape: f32[8,128], index: 5, kind: input, shape index: {}]
  %s6 = inlined_call_operand.hbm [shape: f32[9,8,128], index: 6, kind: output, shape index: {}]
  %s7 = sld [smem:[#allocation0]]
  $region58: #{tpu_custom_call.1} parent=0
    _
  %s9 = ssub.s32 1, %s7
  %s10 = scalar_select 0, %s9, %s7
  $region1: #{tpu_custom_call.1} parent=0
    #allocation2 [shape = 'u8[512]{0}', space=smem, size = 0x200, scoped, tag = 'input window, operand 0, single buffered']
    #allocation3 [shape = 's32[1]{0}', space=sflag, size = 0x4, scoped, tag = 'scoped memory for tpu_custom_call.1']
    #allocation4 [shape = 's32[1]{0}', space=sflag, size = 0x4, scoped, tag = 'scoped memory for tpu_custom_call.1']
    #allocation5 [shape = 's32[1]{0}', space=sflag, size = 0x4, scoped, tag = 'scoped memory for tpu_custom_call.1']
    #allocation6 [shape = 'u8[512]{0}', space=smem, size = 0x200, scoped, tag = 'input window, operand 1, single buffered']
    #allocation7 [shape = 's32[1]{0}', space=sflag, size = 0x4, scoped, tag = 'scoped memory for tpu_custom_call.1']
    #allocation8 [shape = 'u8[4096]{0}', space=vmem, size = 0x1000, scoped, tag = 'input window, operand 2, single buffered']
    #allocation9 [shape = 'u8[4096]{0}', space=vmem, size = 0x1000, scoped, tag = 'input window, operand 3, single buffered']
    #allocation10 [shape = 's32[1]{0}', space=sflag, size = 0x4, scoped, tag = 'scoped memory for tpu_custom_call.1']
    #allocation11 [shape = 'u8[4096]{0}', space=vmem, size = 0x1000, scoped, tag = 'input window, operand 4, single buffered']
    #allocation12 [shape = 'u8[4096]{0}', space=vmem, size = 0x1000, scoped, tag = 'input window, operand 5, single buffered']
    #allocation13 [shape = 's32[1]{0}', space=sflag, size = 0x4, scoped, tag = 'scoped memory for tpu_custom_call.1']
    #allocation14 [shape = 'u8[36864]{0}', space=vmem, size = 0x9000, scoped, tag = 'output window, operand 0, single buffered']
    %11 = vsyncpa [#allocation5], 0
    %12 = vsyncpa [#allocation7], 0
    %13 = vsyncpa [#allocation3], 0
    %14 = vsyncpa [#allocation10], 0
    %15 = vsyncpa [#allocation13], 0
    %16 = vsyncpa [#allocation4], 0
    // Predicated region
    $region2: #{tpu_custom_call.1} parent=1 // pred_check
      _
    $region3: #{tpu_custom_call.1} parent=1 // pred_check_branch
      %18 = sbr.rel (0) target = $region5
    $region4: #{tpu_custom_call.1} parent=1 // pred_region
      %20 = vsyncadd [#allocation5], 0
      %s22 = sshll.u32 %s0, 4
      %s23 = int_to_ptr.hbm [resolvable:$true] %s22
      %25 = dma.hbm_to_smem %s23, 16, [#allocation2], [#allocation5]
    $region5: #{tpu_custom_call.1} parent=1 // pred_fallthru
      _
    // Predicated region
    $region6: #{tpu_custom_call.1} parent=1 // pred_check
      _
    $region7: #{tpu_custom_call.1} parent=1 // pred_check_branch
      %27 = sbr.rel (0) target = $region9
    $region8: #{tpu_custom_call.1} parent=1 // pred_region
      %29 = vsyncadd [#allocation7], 0
      %s31 = sshll.u32 %s1, 4
      %s32 = int_to_ptr.hbm [resolvable:$true] %s31
      %34 = dma.hbm_to_smem %s32, 16, [#allocation6], [#allocation7]
    $region9: #{tpu_custom_call.1} parent=1 // pred_fallthru
      _
    // Predicated region
    $region10: #{tpu_custom_call.1} parent=1 // pred_check
      _
    $region11: #{tpu_custom_call.1} parent=1 // pred_check_branch
      %36 = sbr.rel (0) target = $region13
    $region12: #{tpu_custom_call.1} parent=1 // pred_region
      %38 = vsyncadd [#allocation3], 0
      %s40 = sshll.u32 %s2, 4
      %s41 = int_to_ptr.hbm [resolvable:$true] %s40
      %s42 = sshll.u32 [#allocation8], 4
      %s43 = int_to_ptr.vmem [resolvable:$true] %s42
      %45 = dma.hbm_to_vmem [thread:$0]  %s41, 128, %s43, [#allocation3]
    $region13: #{tpu_custom_call.1} parent=1 // pred_fallthru
      _
    // Predicated region
    $region14: #{tpu_custom_call.1} parent=1 // pred_check
      _
    $region15: #{tpu_custom_call.1} parent=1 // pred_check_branch
      %47 = sbr.rel (0) target = $region17
    $region16: #{tpu_custom_call.1} parent=1 // pred_region
      %49 = vsyncadd [#allocation10], 0
      %s51 = sshll.u32 %s3, 4
      %s52 = int_to_ptr.hbm [resolvable:$true] %s51
      %s53 = sshll.u32 [#allocation9], 4
      %s54 = int_to_ptr.vmem [resolvable:$true] %s53
      %56 = dma.hbm_to_vmem [thread:$0]  %s52, 128, %s54, [#allocation10]
    $region17: #{tpu_custom_call.1} parent=1 // pred_fallthru
      _
    // Predicated region
    $region18: #{tpu_custom_call.1} parent=1 // pred_check
      _
    $region19: #{tpu_custom_call.1} parent=1 // pred_check_branch
      %58 = sbr.rel (0) target = $region21
    $region20: #{tpu_custom_call.1} parent=1 // pred_region
      %60 = vsyncadd [#allocation10], 0
      %s62 = sshll.u32 %s4, 4
      %s63 = int_to_ptr.hbm [resolvable:$true] %s62
      %s64 = sshll.u32 [#allocation11], 4
      %s65 = int_to_ptr.vmem [resolvable:$true] %s64
      %67 = dma.hbm_to_vmem [thread:$0]  %s63, 128, %s65, [#allocation10]
    $region21: #{tpu_custom_call.1} parent=1 // pred_fallthru
      _
    // Predicated region
    $region22: #{tpu_custom_call.1} parent=1 // pred_check
      _
    $region23: #{tpu_custom_call.1} parent=1 // pred_check_branch
      %69 = sbr.rel (0) target = $region25
    $region24: #{tpu_custom_call.1} parent=1 // pred_region
      %71 = vsyncadd [#allocation13], 0
      %s73 = sshll.u32 %s5, 4
      %s74 = int_to_ptr.hbm [resolvable:$true] %s73
      %s75 = sshll.u32 [#allocation12], 4
      %s76 = int_to_ptr.vmem [resolvable:$true] %s75
      %78 = dma.hbm_to_vmem [thread:$0]  %s74, 128, %s76, [#allocation13]
    $region25: #{tpu_custom_call.1} parent=1 // pred_fallthru
      _
    // Predicated region
    $region26: #{tpu_custom_call.1} parent=1 // pred_check
      _
    $region27: #{tpu_custom_call.1} parent=1 // pred_check_branch
      %80 = sbr.rel (0) target = $region29
    $region28: #{tpu_custom_call.1} parent=1 // pred_region
      %82 = dma.done [#allocation5], 16
    $region29: #{tpu_custom_call.1} parent=1 // pred_fallthru
      _
    // Predicated region
    $region30: #{tpu_custom_call.1} parent=1 // pred_check
      _
    $region31: #{tpu_custom_call.1} parent=1 // pred_check_branch
      %84 = sbr.rel (0) target = $region33
    $region32: #{tpu_custom_call.1} parent=1 // pred_region
      %86 = dma.done [#allocation7], 16
    $region33: #{tpu_custom_call.1} parent=1 // pred_fallthru
      _
    // Predicated region
    $region34: #{tpu_custom_call.1} parent=1 // pred_check
      _
    $region35: #{tpu_custom_call.1} parent=1 // pred_check_branch
      %88 = sbr.rel (0) target = $region37
    $region36: #{tpu_custom_call.1} parent=1 // pred_region
      %90 = dma.done [#allocation3], 128
    $region37: #{tpu_custom_call.1} parent=1 // pred_fallthru
      _
    // Predicated region
    $region38: #{tpu_custom_call.1} parent=1 // pred_check
      _
    $region39: #{tpu_custom_call.1} parent=1 // pred_check_branch
      %92 = sbr.rel (0) target = $region41
    $region40: #{tpu_custom_call.1} parent=1 // pred_region
      %94 = dma.done [#allocation10], 128
    $region41: #{tpu_custom_call.1} parent=1 // pred_fallthru
      _
    // Predicated region
    $region42: #{tpu_custom_call.1} parent=1 // pred_check
      _
    $region43: #{tpu_custom_call.1} parent=1 // pred_check_branch
      %96 = sbr.rel (0) target = $region45
    $region44: #{tpu_custom_call.1} parent=1 // pred_region
      %98 = dma.done [#allocation10], 128
    $region45: #{tpu_custom_call.1} parent=1 // pred_fallthru
      _
    // Predicated region
    $region46: #{tpu_custom_call.1} parent=1 // pred_check
      _
    $region47: #{tpu_custom_call.1} parent=1 // pred_check_branch
      %100 = sbr.rel (0) target = $region49
    $region48: #{tpu_custom_call.1} parent=1 // pred_region
      %102 = dma.done [#allocation13], 128
    $region49: #{tpu_custom_call.1} parent=1 // pred_fallthru
      _
    %103 = sfence
    %v104 = vld [vmem:[#allocation8] sm:$0xff]
    %v105 = vld [vmem:[#allocation9] sm:$0xff]
    %v106 = vld [vmem:[#allocation11] sm:$0xff]
    %v107 = vld [vmem:[#allocation12] sm:$0xff]
    %v108 = vand.u32 2147483647, %v105
    %vm109 = vcmp.le.f32.partialorder %v108, 0.7853982
    %vm110 = vcmp.lt.s32.totalorder %v105, 0
    %v111 = vand.u32 %v105, 2139095040
    %v112 = vshrl.u32 %v111, 23
    %v113 = vsub.s32 %v112, 127
    %v114 = vand.u32 2147483647, %v105
    %v115 = vand.u32 %v114, 8388607
    %v116 = vor.u32 %v115, 8388608
    %v117 = vsub.s32 0, %v116
    %v118 = vadd.s32 %v113, 1
    %vm119 = vcmp.gt.s32.totalorder %v118, 0
    %v120 = vsel %vm119, %v118, 0
    %v121 = vshrl.u32 %v120, 5
    %v122 = vand.u32 %v120, 31
    %v123 = vsub.s32 32, %v122
    %v124 = vshrl.u32 683565275, %v123
    %v125 = vshll.u32 683565275, %v122
    %v126 = vshrl.u32 2475754826, %v123
    %v127 = vor.u32 %v125, %v126
    %v128 = vshll.u32 2475754826, %v122
    %v129 = vshrl.u32 2131351028, %v123
    %v130 = vor.u32 %v128, %v129
    %v131 = vshll.u32 2131351028, %v122
    %v132 = vshrl.u32 2102212464, %v123
    %v133 = vor.u32 %v131, %v132
    %v134 = vshll.u32 2102212464, %v122
    %v135 = vshrl.u32 920167782, %v123
    %v136 = vor.u32 %v134, %v135
    %v137 = vshll.u32 920167782, %v122
    %v138 = vshrl.u32 1326507024, %v123
    %v139 = vor.u32 %v137, %v138
    %vm140 = vcmp.lt.s32.totalorder %v121, 1
    %vm141 = vcmp.lt.s32.totalorder %v121, 2
    %vm142 = vcmp.lt.s32.totalorder %v121, 3
    %vm143 = vcmp.lt.s32.totalorder %v121, 4
    %v144 = vsel %vm140, %v124, %v127
    %v145 = vsel %vm143, %v133, 2102212464
    %v146 = vsel %vm142, %v130, %v145
    %v147 = vsel %vm141, %v144, %v146
    %v148 = vsel %vm140, %v127, %v130
    %v149 = vsel %vm143, %v136, 920167782
    %v150 = vsel %vm142, %v133, %v149
    %v151 = vsel %vm141, %v148, %v150
    %v152 = vsel %vm140, %v130, %v133
    %v153 = vsel %vm143, %v139, 1326507024
    %v154 = vsel %vm142, %v136, %v153
    %v155 = vsel %vm141, %v152, %v154
    %v156 = vshll.u32 %v116, 8
    %v157 = vand.u32 %v156, 65535
    %v158 = vshrl.u32 %v156, 16
    %v159 = vand.u32 %v155, 65535
    %v160 = vshrl.u32 %v155, 16
    %v161 = vmul.u32 %v157, %v159
    %v162 = vmul.u32 %v157, %v160
    %v163 = vmul.u32 %v158, %v159
    %v164 = vmul.u32 %v158, %v160
    %v165 = vshll.u32 %v162, 16
    %v166 = vshrl.u32 %v162, 16
    %v167 = vshll.u32 %v163, 16
    %v168 = vshrl.u32 %v163, 16
    %vm169 = vc.u32 %v161, %v165
    %v170 = vsel %vm169, 1, 0
    %v171 = vadd.s32 %v161, %v165
    %v172 = vadd.s32 %v164, %v170
    %vm173 = vc.u32 %v171, %v167
    %v174 = vsel %vm173, 1, 0
    %v175 = vadd.s32 %v171, %v167
    %v176 = vadd.s32 %v172, %v174
    %v177 = vadd.s32 %v176, %v166
    %v178 = vadd.s32 %v177, %v168
    %v179 = vand.u32 %v156, 65535
    %v180 = vshrl.u32 %v156, 16
    %v181 = vand.u32 %v151, 65535
    %v182 = vshrl.u32 %v151, 16
    %v183 = vmul.u32 %v179, %v181
    %v184 = vmul.u32 %v179, %v182
    %v185 = vmul.u32 %v180, %v181
    %v186 = vmul.u32 %v180, %v182
    %v187 = vshll.u32 %v184, 16
    %v188 = vshrl.u32 %v184, 16
    %v189 = vshll.u32 %v185, 16
    %v190 = vshrl.u32 %v185, 16
    %vm191 = vc.u32 %v183, %v187
    %v192 = vsel %vm191, 1, 0
    %v193 = vadd.s32 %v183, %v187
    %v194 = vadd.s32 %v186, %v192
    %vm195 = vc.u32 %v193, %v189
    %v196 = vsel %vm195, 1, 0
    %v197 = vadd.s32 %v193, %v189
    %v198 = vadd.s32 %v194, %v196
    %v199 = vadd.s32 %v198, %v188
    %v200 = vadd.s32 %v199, %v190
    %v201 = vmul.u32 %v156, %v147
    %v202 = vadd.s32 %v178, %v197
    %vm203 = vc.u32 %v178, %v197
    %v204 = vadd.s32 %v200, 1
    %v205 = vsel %vm203, %v204, %v200
    %v206 = vadd.s32 %v201, %v205
    %v207 = vadd.s32 %v206, 536870912
    %v208 = vshrl.u32 %v207, 30
    %v209 = vshll.u32 %v208, 30
    %v210 = vsub.s32 %v206, %v209
    %vm211 = vcmp.lt.s32.totalorder %v210, 0
    %v212 = vsub.s32 0, %v210
    %v213 = vsel %vm211, %v212, %v210
    %v214 = vclz %v213
    %v215 = vsub.s32 %v214, 2
    %vm216 = vcmp.gt.s32.totalorder 0, %v215
    %v217 = vsel %vm216, 0, %v215
    %v218 = vsub.s32 32, %v217
    %v219 = vshll.u32 %v210, %v217
    %v220 = vshrl.u32 %v202, %v218
    %v221 = vor.u32 %v219, %v220
    %v222 = vsub.s32 4294967266, %v217
    %v223 = vadd.s32 %v222, 127
    %v224 = vshll.u32 %v223, 23
    %v225 = vor.u32 4788187, %v224
    %v226 = vand.u32 2147483647, %v225
    %v228 = vcvt.s32.f32 %v221
    %v229 = vmul.f32 %v228, %v226
    %v230 = vxor.u32 %v229, 2147483648
    %v231 = vsel %vm110, %v230, %v229
    %v232 = vsub.s32 4, %v208
    %v233 = vsel %vm110, %v232, %v208
    %v234 = vsel %vm109, %v105, %v231
    %v235 = vsel %vm109, 0, %v233
    %v236 = vmul.f32 %v234, %v234
    %v237 = vmul.f32 %v236, -0.001358992
    %v238 = vadd.f32 %v237, 0.041655596
    %v239 = vmul.f32 %v236, %v238
    %v240 = vadd.f32 %v239, -0.4999988
    %v241 = vmul.f32 %v236, %v240
    %v242 = vadd.f32 1.0, %v241
    %v243 = vmul.f32 %v234, %v234
    %v244 = vmul.f32 %v243, -0.00019511016
    %v245 = vadd.f32 %v244, 0.008332121
    %v246 = vmul.f32 %v243, %v245
    %v247 = vadd.f32 %v246, -0.16666654
    %v248 = vmul.f32 %v243, %v247
    %v249 = vadd.f32 %v248, 1.0
    %v250 = vmul.f32 %v249, %v234
    %vm251 = vweird.f32 %v105
    %v252 = vand.u32 %v235, 3
    %vm253 = vcmp.lt.s32.totalorder %v252, 2
    %vm254 = vcmp.eq.s32.totalorder %v252, 0
    %v255 = vxor.u32 %v250, 2147483648
    %v256 = vsel %vm254, %v242, %v255
    %vm257 = vcmp.eq.s32.totalorder %v252, 2
    %v258 = vxor.u32 %v242, 2147483648
    %v259 = vsel %vm257, %v258, %v250
    %v260 = vsel %vm253, %v256, %v259
    %v261 = vsel %vm251, nan, %v260
    %v262 = vand.u32 2147483647, %v105
    %vm263 = vcmp.le.f32.partialorder %v262, 0.7853982
    %vm264 = vcmp.lt.s32.totalorder %v105, 0
    %v265 = vand.u32 %v105, 2139095040
    %v266 = vshrl.u32 %v265, 23
    %v267 = vsub.s32 %v266, 127
    %v268 = vand.u32 2147483647, %v105
    %v269 = vand.u32 %v268, 8388607
    %v270 = vor.u32 %v269, 8388608
    %v271 = vsub.s32 0, %v270
    %v272 = vadd.s32 %v267, 1
    %vm273 = vcmp.gt.s32.totalorder %v272, 0
    %v274 = vsel %vm273, %v272, 0
    %v275 = vshrl.u32 %v274, 5
    %v276 = vand.u32 %v274, 31
    %v277 = vsub.s32 32, %v276
    %v278 = vshrl.u32 683565275, %v277
    %v279 = vshll.u32 683565275, %v276
    %v280 = vshrl.u32 2475754826, %v277
    %v281 = vor.u32 %v279, %v280
    %v282 = vshll.u32 2475754826, %v276
    %v283 = vshrl.u32 2131351028, %v277
    %v284 = vor.u32 %v282, %v283
    %v285 = vshll.u32 2131351028, %v276
    %v286 = vshrl.u32 2102212464, %v277
    %v287 = vor.u32 %v285, %v286
    %v288 = vshll.u32 2102212464, %v276
    %v289 = vshrl.u32 920167782, %v277
    %v290 = vor.u32 %v288, %v289
    %v291 = vshll.u32 920167782, %v276
    %v292 = vshrl.u32 1326507024, %v277
    %v293 = vor.u32 %v291, %v292
    %vm294 = vcmp.lt.s32.totalorder %v275, 1
    %vm295 = vcmp.lt.s32.totalorder %v275, 2
    %vm296 = vcmp.lt.s32.totalorder %v275, 3
    %vm297 = vcmp.lt.s32.totalorder %v275, 4
    %v298 = vsel %vm294, %v278, %v281
    %v299 = vsel %vm297, %v287, 2102212464
    %v300 = vsel %vm296, %v284, %v299
    %v301 = vsel %vm295, %v298, %v300
    %v302 = vsel %vm294, %v281, %v284
    %v303 = vsel %vm297, %v290, 920167782
    %v304 = vsel %vm296, %v287, %v303
    %v305 = vsel %vm295, %v302, %v304
    %v306 = vsel %vm294, %v284, %v287
    %v307 = vsel %vm297, %v293, 1326507024
    %v308 = vsel %vm296, %v290, %v307
    %v309 = vsel %vm295, %v306, %v308
    %v310 = vshll.u32 %v270, 8
    %v311 = vand.u32 %v310, 65535
    %v312 = vshrl.u32 %v310, 16
    %v313 = vand.u32 %v309, 65535
    %v314 = vshrl.u32 %v309, 16
    %v315 = vmul.u32 %v311, %v313
    %v316 = vmul.u32 %v311, %v314
    %v317 = vmul.u32 %v312, %v313
    %v318 = vmul.u32 %v312, %v314
    %v319 = vshll.u32 %v316, 16
    %v320 = vshrl.u32 %v316, 16
    %v321 = vshll.u32 %v317, 16
    %v322 = vshrl.u32 %v317, 16
    %vm323 = vc.u32 %v315, %v319
    %v324 = vsel %vm323, 1, 0
    %v325 = vadd.s32 %v315, %v319
    %v326 = vadd.s32 %v318, %v324
    %vm327 = vc.u32 %v325, %v321
    %v328 = vsel %vm327, 1, 0
    %v329 = vadd.s32 %v325, %v321
    %v330 = vadd.s32 %v326, %v328
    %v331 = vadd.s32 %v330, %v320
    %v332 = vadd.s32 %v331, %v322
    %v333 = vand.u32 %v310, 65535
    %v334 = vshrl.u32 %v310, 16
    %v335 = vand.u32 %v305, 65535
    %v336 = vshrl.u32 %v305, 16
    %v337 = vmul.u32 %v333, %v335
    %v338 = vmul.u32 %v333, %v336
    %v339 = vmul.u32 %v334, %v335
    %v340 = vmul.u32 %v334, %v336
    %v341 = vshll.u32 %v338, 16
    %v342 = vshrl.u32 %v338, 16
    %v343 = vshll.u32 %v339, 16
    %v344 = vshrl.u32 %v339, 16
    %vm345 = vc.u32 %v337, %v341
    %v346 = vsel %vm345, 1, 0
    %v347 = vadd.s32 %v337, %v341
    %v348 = vadd.s32 %v340, %v346
    %vm349 = vc.u32 %v347, %v343
    %v350 = vsel %vm349, 1, 0
    %v351 = vadd.s32 %v347, %v343
    %v352 = vadd.s32 %v348, %v350
    %v353 = vadd.s32 %v352, %v342
    %v354 = vadd.s32 %v353, %v344
    %v355 = vmul.u32 %v310, %v301
    %v356 = vadd.s32 %v332, %v351
    %vm357 = vc.u32 %v332, %v351
    %v358 = vadd.s32 %v354, 1
    %v359 = vsel %vm357, %v358, %v354
    %v360 = vadd.s32 %v355, %v359
    %v361 = vadd.s32 %v360, 536870912
    %v362 = vshrl.u32 %v361, 30
    %v363 = vshll.u32 %v362, 30
    %v364 = vsub.s32 %v360, %v363
    %vm365 = vcmp.lt.s32.totalorder %v364, 0
    %v366 = vsub.s32 0, %v364
    %v367 = vsel %vm365, %v366, %v364
    %v368 = vclz %v367
    %v369 = vsub.s32 %v368, 2
    %vm370 = vcmp.gt.s32.totalorder 0, %v369
    %v371 = vsel %vm370, 0, %v369
    %v372 = vsub.s32 32, %v371
    %v373 = vshll.u32 %v364, %v371
    %v374 = vshrl.u32 %v356, %v372
    %v375 = vor.u32 %v373, %v374
    %v376 = vsub.s32 4294967266, %v371
    %v377 = vadd.s32 %v376, 127
    %v378 = vshll.u32 %v377, 23
    %v379 = vor.u32 4788187, %v378
    %v380 = vand.u32 2147483647, %v379
    %v382 = vcvt.s32.f32 %v375
    %v383 = vmul.f32 %v382, %v380
    %v384 = vxor.u32 %v383, 2147483648
    %v385 = vsel %vm264, %v384, %v383
    %v386 = vsub.s32 4, %v362
    %v387 = vsel %vm264, %v386, %v362
    %v388 = vsel %vm263, %v105, %v385
    %v389 = vsel %vm263, 0, %v387
    %v390 = vmul.f32 %v388, %v388
    %v391 = vmul.f32 %v390, -0.001358992
    %v392 = vadd.f32 %v391, 0.041655596
    %v393 = vmul.f32 %v390, %v392
    %v394 = vadd.f32 %v393, -0.4999988
    %v395 = vmul.f32 %v390, %v394
    %v396 = vadd.f32 1.0, %v395
    %v397 = vmul.f32 %v388, %v388
    %v398 = vmul.f32 %v397, -0.00019511016
    %v399 = vadd.f32 %v398, 0.008332121
    %v400 = vmul.f32 %v397, %v399
    %v401 = vadd.f32 %v400, -0.16666654
    %v402 = vmul.f32 %v397, %v401
    %v403 = vadd.f32 %v402, 1.0
    %v404 = vmul.f32 %v403, %v388
    %vm405 = vweird.f32 %v105
    %v406 = vadd.s32 %v389, 3
    %v407 = vand.u32 %v406, 3
    %vm408 = vcmp.lt.s32.totalorder %v407, 2
    %vm409 = vcmp.eq.s32.totalorder %v407, 0
    %v410 = vxor.u32 %v404, 2147483648
    %v411 = vsel %vm409, %v396, %v410
    %vm412 = vcmp.eq.s32.totalorder %v407, 2
    %v413 = vxor.u32 %v396, 2147483648
    %v414 = vsel %vm412, %v413, %v404
    %v415 = vsel %vm408, %v411, %v414
    %v416 = vsel %vm405, nan, %v415
    %v417 = vadd.f32 %v106, 0.001
    %v418 = vmul.f32 %v417, %v417
    %v419 = vrcp.pop %v418
    %v420 = vmul.f32 %v418, %v419
    %v421 = vsub.f32 1.0, %v420
    %v422 = vmul.f32 %v419, %v421
    %v423 = vadd.f32 %v419, %v422
    %vm424 = vweird.f32 %v418
    %vm425 = vweird.f32 %v419
    %vm426 = vmor %vm424, %vm425
    %v427 = vsel %vm426, %v419, %v423
    %v428 = vand.u32 2147483647, %v418
    %vm429 = vcmp.eq.f32.partialorder %v428, 8.507059e+37
    %v430 = vand.u32 %v418, 2147483648
    %v431 = vor.u32 1.1754944e-38, %v430
    %v432 = vsel %vm429, %v431, %v427
    %v433 = vmul.f32 1.0, %v432
    %v434 = vmul.f32 %v106, 6.2831855
    %v435 = vmul.f32 %v434, %v106
    %v436 = vrcp.pop %v435
    %v437 = vmul.f32 %v435, %v436
    %v438 = vsub.f32 1.0, %v437
    %v439 = vmul.f32 %v436, %v438
    %v440 = vadd.f32 %v436, %v439
    %vm441 = vweird.f32 %v435
    %vm442 = vweird.f32 %v436
    %vm443 = vmor %vm441, %vm442
    %v444 = vsel %vm443, %v436, %v440
    %v445 = vand.u32 2147483647, %v435
    %vm446 = vcmp.eq.f32.partialorder %v445, 8.507059e+37
    %v447 = vand.u32 %v435, 2147483648
    %v448 = vor.u32 1.1754944e-38, %v447
    %v449 = vsel %vm446, %v448, %v444
    %v450 = vmul.f32 1.0, %v449
    %s451 = sld [smem:[#allocation2]]
    %s452 = sld [smem:[#allocation6]]
    %v453 = vstv %s451
    %v454 = vmul.f32 %v453, %v261
    %v455 = vstv %s452
    %v456 = vmul.f32 %v455, %v416
    %v457 = vadd.f32 %v454, %v456
    %s458 = ssub.f32 0.0, %s451
    %v459 = vstv %s458
    %v460 = vmul.f32 %v459, %v416
    %v461 = vmul.f32 %v455, %v261
    %v462 = vadd.f32 %v460, %v461
    %v463 = vmul.f32 %v457, %v457
    %v464 = vmul.f32 %v462, %v462
    %v465 = vadd.f32 %v463, %v464
    %v466 = vmul.f32 %v465, -0.5
    %v467 = vmul.f32 %v466, %v433
    %v468 = vmul.f32 %v467, 1.442695
    %v469 = vpow.pop %v468
    %v470 = vmul.f32 %v104, %v457
    %v471 = vadd.f32 %v470, %v107
    %v472 = vand.u32 2147483647, %v471
    %vm473 = vcmp.le.f32.partialorder %v472, 0.7853982
    %vm474 = vcmp.lt.s32.totalorder %v471, 0
    %v475 = vand.u32 %v471, 2139095040
    %v476 = vshrl.u32 %v475, 23
    %v477 = vsub.s32 %v476, 127
    %v478 = vand.u32 2147483647, %v471
    %v479 = vand.u32 %v478, 8388607
    %v480 = vor.u32 %v479, 8388608
    %v481 = vsub.s32 0, %v480
    %v482 = vadd.s32 %v477, 1
    %vm483 = vcmp.gt.s32.totalorder %v482, 0
    %v484 = vsel %vm483, %v482, 0
    %v485 = vshrl.u32 %v484, 5
    %v486 = vand.u32 %v484, 31
    %v487 = vsub.s32 32, %v486
    %v488 = vshrl.u32 683565275, %v487
    %v489 = vshll.u32 683565275, %v486
    %v490 = vshrl.u32 2475754826, %v487
    %v491 = vor.u32 %v489, %v490
    %v492 = vshll.u32 2475754826, %v486
    %v493 = vshrl.u32 2131351028, %v487
    %v494 = vor.u32 %v492, %v493
    %v495 = vshll.u32 2131351028, %v486
    %v496 = vshrl.u32 2102212464, %v487
    %v497 = vor.u32 %v495, %v496
    %v498 = vshll.u32 2102212464, %v486
    %v499 = vshrl.u32 920167782, %v487
    %v500 = vor.u32 %v498, %v499
    %v501 = vshll.u32 920167782, %v486
    %v502 = vshrl.u32 1326507024, %v487
    %v503 = vor.u32 %v501, %v502
    %vm504 = vcmp.lt.s32.totalorder %v485, 1
    %vm505 = vcmp.lt.s32.totalorder %v485, 2
    %vm506 = vcmp.lt.s32.totalorder %v485, 3
    %vm507 = vcmp.lt.s32.totalorder %v485, 4
    %v508 = vsel %vm504, %v488, %v491
    %v509 = vsel %vm507, %v497, 2102212464
    %v510 = vsel %vm506, %v494, %v509
    %v511 = vsel %vm505, %v508, %v510
    %v512 = vsel %vm504, %v491, %v494
    %v513 = vsel %vm507, %v500, 920167782
    %v514 = vsel %vm506, %v497, %v513
    %v515 = vsel %vm505, %v512, %v514
    %v516 = vsel %vm504, %v494, %v497
    %v517 = vsel %vm507, %v503, 1326507024
    %v518 = vsel %vm506, %v500, %v517
    %v519 = vsel %vm505, %v516, %v518
    %v520 = vshll.u32 %v480, 8
    %v521 = vand.u32 %v520, 65535
    %v522 = vshrl.u32 %v520, 16
    %v523 = vand.u32 %v519, 65535
    %v524 = vshrl.u32 %v519, 16
    %v525 = vmul.u32 %v521, %v523
    %v526 = vmul.u32 %v521, %v524
    %v527 = vmul.u32 %v522, %v523
    %v528 = vmul.u32 %v522, %v524
    %v529 = vshll.u32 %v526, 16
    %v530 = vshrl.u32 %v526, 16
    %v531 = vshll.u32 %v527, 16
    %v532 = vshrl.u32 %v527, 16
    %vm533 = vc.u32 %v525, %v529
    %v534 = vsel %vm533, 1, 0
    %v535 = vadd.s32 %v525, %v529
    %v536 = vadd.s32 %v528, %v534
    %vm537 = vc.u32 %v535, %v531
    %v538 = vsel %vm537, 1, 0
    %v539 = vadd.s32 %v535, %v531
    %v540 = vadd.s32 %v536, %v538
    %v541 = vadd.s32 %v540, %v530
    %v542 = vadd.s32 %v541, %v532
    %v543 = vand.u32 %v520, 65535
    %v544 = vshrl.u32 %v520, 16
    %v545 = vand.u32 %v515, 65535
    %v546 = vshrl.u32 %v515, 16
    %v547 = vmul.u32 %v543, %v545
    %v548 = vmul.u32 %v543, %v546
    %v549 = vmul.u32 %v544, %v545
    %v550 = vmul.u32 %v544, %v546
    %v551 = vshll.u32 %v548, 16
    %v552 = vshrl.u32 %v548, 16
    %v553 = vshll.u32 %v549, 16
    %v554 = vshrl.u32 %v549, 16
    %vm555 = vc.u32 %v547, %v551
    %v556 = vsel %vm555, 1, 0
    %v557 = vadd.s32 %v547, %v551
    %v558 = vadd.s32 %v550, %v556
    %vm559 = vc.u32 %v557, %v553
    %v560 = vsel %vm559, 1, 0
    %v561 = vadd.s32 %v557, %v553
    %v562 = vadd.s32 %v558, %v560
    %v563 = vadd.s32 %v562, %v552
    %v564 = vadd.s32 %v563, %v554
    %v565 = vmul.u32 %v520, %v511
    %v566 = vadd.s32 %v542, %v561
    %vm567 = vc.u32 %v542, %v561
    %v568 = vadd.s32 %v564, 1
    %v569 = vsel %vm567, %v568, %v564
    %v570 = vadd.s32 %v565, %v569
    %v571 = vadd.s32 %v570, 536870912
    %v572 = vshrl.u32 %v571, 30
    %v573 = vshll.u32 %v572, 30
    %v574 = vsub.s32 %v570, %v573
    %vm575 = vcmp.lt.s32.totalorder %v574, 0
    %v576 = vsub.s32 0, %v574
    %v577 = vsel %vm575, %v576, %v574
    %v578 = vclz %v577
    %v579 = vsub.s32 %v578, 2
    %vm580 = vcmp.gt.s32.totalorder 0, %v579
    %v581 = vsel %vm580, 0, %v579
    %v582 = vsub.s32 32, %v581
    %v583 = vshll.u32 %v574, %v581
    %v584 = vshrl.u32 %v566, %v582
    %v585 = vor.u32 %v583, %v584
    %v586 = vsub.s32 4294967266, %v581
    %v587 = vadd.s32 %v586, 127
    %v588 = vshll.u32 %v587, 23
    %v589 = vor.u32 4788187, %v588
    %v590 = vand.u32 2147483647, %v589
    %v592 = vcvt.s32.f32 %v585
    %v593 = vmul.f32 %v592, %v590
    %v594 = vxor.u32 %v593, 2147483648
    %v595 = vsel %vm474, %v594, %v593
    %v596 = vsub.s32 4, %v572
    %v597 = vsel %vm474, %v596, %v572
    %v598 = vsel %vm473, %v471, %v595
    %v599 = vsel %vm473, 0, %v597
    %v600 = vmul.f32 %v598, %v598
    %v601 = vmul.f32 %v600, -0.001358992
    %v602 = vadd.f32 %v601, 0.041655596
    %v603 = vmul.f32 %v600, %v602
    %v604 = vadd.f32 %v603, -0.4999988
    %v605 = vmul.f32 %v600, %v604
    %v606 = vadd.f32 1.0, %v605
    %v607 = vmul.f32 %v598, %v598
    %v608 = vmul.f32 %v607, -0.00019511016
    %v609 = vadd.f32 %v608, 0.008332121
    %v610 = vmul.f32 %v607, %v609
    %v611 = vadd.f32 %v610, -0.16666654
    %v612 = vmul.f32 %v607, %v611
    %v613 = vadd.f32 %v612, 1.0
    %v614 = vmul.f32 %v613, %v598
    %vm615 = vweird.f32 %v471
    %v616 = vand.u32 %v599, 3
    %vm617 = vcmp.lt.s32.totalorder %v616, 2
    %vm618 = vcmp.eq.s32.totalorder %v616, 0
    %v619 = vxor.u32 %v614, 2147483648
    %v620 = vsel %vm618, %v606, %v619
    %vm621 = vcmp.eq.s32.totalorder %v616, 2
    %v622 = vxor.u32 %v606, 2147483648
    %v623 = vsel %vm621, %v622, %v614
    %v624 = vsel %vm617, %v620, %v623
    %v625 = vsel %vm615, nan, %v624
    %v626 = vmul.f32 %v469, %v625
    %v627 = vmul.f32 %v626, %v450
    %628 = vst [vmem:[#allocation14] sm:$0xff] %v627
    %s629 = sld [smem:[#allocation2 + $0x1]]
    %s630 = sld [smem:[#allocation6 + $0x1]]
    %v631 = vstv %s629
    %v632 = vmul.f32 %v631, %v261
    %v633 = vstv %s630
    %v634 = vmul.f32 %v633, %v416
    %v635 = vadd.f32 %v632, %v634
    %s636 = ssub.f32 0.0, %s629
    %v637 = vstv %s636
    %v638 = vmul.f32 %v637, %v416
    %v639 = vmul.f32 %v633, %v261
    %v640 = vadd.f32 %v638, %v639
    %v641 = vmul.f32 %v635, %v635
    %v642 = vmul.f32 %v640, %v640
    %v643 = vadd.f32 %v641, %v642
    %v644 = vmul.f32 %v643, -0.5
    %v645 = vmul.f32 %v644, %v433
    %v646 = vmul.f32 %v645, 1.442695
    %v647 = vpow.pop %v646
    %v648 = vmul.f32 %v104, %v635
    %v649 = vadd.f32 %v648, %v107
    %v650 = vand.u32 2147483647, %v649
    %vm651 = vcmp.le.f32.partialorder %v650, 0.7853982
    %vm652 = vcmp.lt.s32.totalorder %v649, 0
    %v653 = vand.u32 %v649, 2139095040
    %v654 = vshrl.u32 %v653, 23
    %v655 = vsub.s32 %v654, 127
    %v656 = vand.u32 2147483647, %v649
    %v657 = vand.u32 %v656, 8388607
    %v658 = vor.u32 %v657, 8388608
    %v659 = vsub.s32 0, %v658
    %v660 = vadd.s32 %v655, 1
    %vm661 = vcmp.gt.s32.totalorder %v660, 0
    %v662 = vsel %vm661, %v660, 0
    %v663 = vshrl.u32 %v662, 5
    %v664 = vand.u32 %v662, 31
    %v665 = vsub.s32 32, %v664
    %v666 = vshrl.u32 683565275, %v665
    %v667 = vshll.u32 683565275, %v664
    %v668 = vshrl.u32 2475754826, %v665
    %v669 = vor.u32 %v667, %v668
    %v670 = vshll.u32 2475754826, %v664
    %v671 = vshrl.u32 2131351028, %v665
    %v672 = vor.u32 %v670, %v671
    %v673 = vshll.u32 2131351028, %v664
    %v674 = vshrl.u32 2102212464, %v665
    %v675 = vor.u32 %v673, %v674
    %v676 = vshll.u32 2102212464, %v664
    %v677 = vshrl.u32 920167782, %v665
    %v678 = vor.u32 %v676, %v677
    %v679 = vshll.u32 920167782, %v664
    %v680 = vshrl.u32 1326507024, %v665
    %v681 = vor.u32 %v679, %v680
    %vm682 = vcmp.lt.s32.totalorder %v663, 1
    %vm683 = vcmp.lt.s32.totalorder %v663, 2
    %vm684 = vcmp.lt.s32.totalorder %v663, 3
    %vm685 = vcmp.lt.s32.totalorder %v663, 4
    %v686 = vsel %vm682, %v666, %v669
    %v687 = vsel %vm685, %v675, 2102212464
    %v688 = vsel %vm684, %v672, %v687
    %v689 = vsel %vm683, %v686, %v688
    %v690 = vsel %vm682, %v669, %v672
    %v691 = vsel %vm685, %v678, 920167782
    %v692 = vsel %vm684, %v675, %v691
    %v693 = vsel %vm683, %v690, %v692
    %v694 = vsel %vm682, %v672, %v675
    %v695 = vsel %vm685, %v681, 1326507024
    %v696 = vsel %vm684, %v678, %v695
    %v697 = vsel %vm683, %v694, %v696
    %v698 = vshll.u32 %v658, 8
    %v699 = vand.u32 %v698, 65535
    %v700 = vshrl.u32 %v698, 16
    %v701 = vand.u32 %v697, 65535
    %v702 = vshrl.u32 %v697, 16
    %v703 = vmul.u32 %v699, %v701
    %v704 = vmul.u32 %v699, %v702
    %v705 = vmul.u32 %v700, %v701
    %v706 = vmul.u32 %v700, %v702
    %v707 = vshll.u32 %v704, 16
    %v708 = vshrl.u32 %v704, 16
    %v709 = vshll.u32 %v705, 16
    %v710 = vshrl.u32 %v705, 16
    %vm711 = vc.u32 %v703, %v707
    %v712 = vsel %vm711, 1, 0
    %v713 = vadd.s32 %v703, %v707
    %v714 = vadd.s32 %v706, %v712
    %vm715 = vc.u32 %v713, %v709
    %v716 = vsel %vm715, 1, 0
    %v717 = vadd.s32 %v713, %v709
    %v718 = vadd.s32 %v714, %v716
    %v719 = vadd.s32 %v718, %v708
    %v720 = vadd.s32 %v719, %v710
    %v721 = vand.u32 %v698, 65535
    %v722 = vshrl.u32 %v698, 16
    %v723 = vand.u32 %v693, 65535
    %v724 = vshrl.u32 %v693, 16
    %v725 = vmul.u32 %v721, %v723
    %v726 = vmul.u32 %v721, %v724
    %v727 = vmul.u32 %v722, %v723
    %v728 = vmul.u32 %v722, %v724
    %v729 = vshll.u32 %v726, 16
    %v730 = vshrl.u32 %v726, 16
    %v731 = vshll.u32 %v727, 16
    %v732 = vshrl.u32 %v727, 16
    %vm733 = vc.u32 %v725, %v729
    %v734 = vsel %vm733, 1, 0
    %v735 = vadd.s32 %v725, %v729
    %v736 = vadd.s32 %v728, %v734
    %vm737 = vc.u32 %v735, %v731
    %v738 = vsel %vm737, 1, 0
    %v739 = vadd.s32 %v735, %v731
    %v740 = vadd.s32 %v736, %v738
    %v741 = vadd.s32 %v740, %v730
    %v742 = vadd.s32 %v741, %v732
    %v743 = vmul.u32 %v698, %v689
    %v744 = vadd.s32 %v720, %v739
    %vm745 = vc.u32 %v720, %v739
    %v746 = vadd.s32 %v742, 1
    %v747 = vsel %vm745, %v746, %v742
    %v748 = vadd.s32 %v743, %v747
    %v749 = vadd.s32 %v748, 536870912
    %v750 = vshrl.u32 %v749, 30
    %v751 = vshll.u32 %v750, 30
    %v752 = vsub.s32 %v748, %v751
    %vm753 = vcmp.lt.s32.totalorder %v752, 0
    %v754 = vsub.s32 0, %v752
    %v755 = vsel %vm753, %v754, %v752
    %v756 = vclz %v755
    %v757 = vsub.s32 %v756, 2
    %vm758 = vcmp.gt.s32.totalorder 0, %v757
    %v759 = vsel %vm758, 0, %v757
    %v760 = vsub.s32 32, %v759
    %v761 = vshll.u32 %v752, %v759
    %v762 = vshrl.u32 %v744, %v760
    %v763 = vor.u32 %v761, %v762
    %v764 = vsub.s32 4294967266, %v759
    %v765 = vadd.s32 %v764, 127
    %v766 = vshll.u32 %v765, 23
    %v767 = vor.u32 4788187, %v766
    %v768 = vand.u32 2147483647, %v767
    %v770 = vcvt.s32.f32 %v763
    %v771 = vmul.f32 %v770, %v768
    %v772 = vxor.u32 %v771, 2147483648
    %v773 = vsel %vm652, %v772, %v771
    %v774 = vsub.s32 4, %v750
    %v775 = vsel %vm652, %v774, %v750
    %v776 = vsel %vm651, %v649, %v773
    %v777 = vsel %vm651, 0, %v775
    %v778 = vmul.f32 %v776, %v776
    %v779 = vmul.f32 %v778, -0.001358992
    %v780 = vadd.f32 %v779, 0.041655596
    %v781 = vmul.f32 %v778, %v780
    %v782 = vadd.f32 %v781, -0.4999988
    %v783 = vmul.f32 %v778, %v782
    %v784 = vadd.f32 1.0, %v783
    %v785 = vmul.f32 %v776, %v776
    %v786 = vmul.f32 %v785, -0.00019511016
    %v787 = vadd.f32 %v786, 0.008332121
    %v788 = vmul.f32 %v785, %v787
    %v789 = vadd.f32 %v788, -0.16666654
    %v790 = vmul.f32 %v785, %v789
    %v791 = vadd.f32 %v790, 1.0
    %v792 = vmul.f32 %v791, %v776
    %vm793 = vweird.f32 %v649
    %v794 = vand.u32 %v777, 3
    %vm795 = vcmp.lt.s32.totalorder %v794, 2
    %vm796 = vcmp.eq.s32.totalorder %v794, 0
    %v797 = vxor.u32 %v792, 2147483648
    %v798 = vsel %vm796, %v784, %v797
    %vm799 = vcmp.eq.s32.totalorder %v794, 2
    %v800 = vxor.u32 %v784, 2147483648
    %v801 = vsel %vm799, %v800, %v792
    %v802 = vsel %vm795, %v798, %v801
    %v803 = vsel %vm793, nan, %v802
    %v804 = vmul.f32 %v647, %v803
    %v805 = vmul.f32 %v804, %v450
    %s806 = scalar_lea.vmem [#allocation14], 8
    %807 = vst [vmem:[%s806] sm:$0xff] %v805
    %s808 = sld [smem:[#allocation2 + $0x2]]
    %s809 = sld [smem:[#allocation6 + $0x2]]
    %v810 = vstv %s808
    %v811 = vmul.f32 %v810, %v261
    %v812 = vstv %s809
    %v813 = vmul.f32 %v812, %v416
    %v814 = vadd.f32 %v811, %v813
    %s815 = ssub.f32 0.0, %s808
    %v816 = vstv %s815
    %v817 = vmul.f32 %v816, %v416
    %v818 = vmul.f32 %v812, %v261
    %v819 = vadd.f32 %v817, %v818
    %v820 = vmul.f32 %v814, %v814
    %v821 = vmul.f32 %v819, %v819
    %v822 = vadd.f32 %v820, %v821
    %v823 = vmul.f32 %v822, -0.5
    %v824 = vmul.f32 %v823, %v433
    %v825 = vmul.f32 %v824, 1.442695
    %v826 = vpow.pop %v825
    %v827 = vmul.f32 %v104, %v814
    %v828 = vadd.f32 %v827, %v107
    %v829 = vand.u32 2147483647, %v828
    %vm830 = vcmp.le.f32.partialorder %v829, 0.7853982
    %vm831 = vcmp.lt.s32.totalorder %v828, 0
    %v832 = vand.u32 %v828, 2139095040
    %v833 = vshrl.u32 %v832, 23
    %v834 = vsub.s32 %v833, 127
    %v835 = vand.u32 2147483647, %v828
    %v836 = vand.u32 %v835, 8388607
    %v837 = vor.u32 %v836, 8388608
    %v838 = vsub.s32 0, %v837
    %v839 = vadd.s32 %v834, 1
    %vm840 = vcmp.gt.s32.totalorder %v839, 0
    %v841 = vsel %vm840, %v839, 0
    %v842 = vshrl.u32 %v841, 5
    %v843 = vand.u32 %v841, 31
    %v844 = vsub.s32 32, %v843
    %v845 = vshrl.u32 683565275, %v844
    %v846 = vshll.u32 683565275, %v843
    %v847 = vshrl.u32 2475754826, %v844
    %v848 = vor.u32 %v846, %v847
    %v849 = vshll.u32 2475754826, %v843
    %v850 = vshrl.u32 2131351028, %v844
    %v851 = vor.u32 %v849, %v850
    %v852 = vshll.u32 2131351028, %v843
    %v853 = vshrl.u32 2102212464, %v844
    %v854 = vor.u32 %v852, %v853
    %v855 = vshll.u32 2102212464, %v843
    %v856 = vshrl.u32 920167782, %v844
    %v857 = vor.u32 %v855, %v856
    %v858 = vshll.u32 920167782, %v843
    %v859 = vshrl.u32 1326507024, %v844
    %v860 = vor.u32 %v858, %v859
    %vm861 = vcmp.lt.s32.totalorder %v842, 1
    %vm862 = vcmp.lt.s32.totalorder %v842, 2
    %vm863 = vcmp.lt.s32.totalorder %v842, 3
    %vm864 = vcmp.lt.s32.totalorder %v842, 4
    %v865 = vsel %vm861, %v845, %v848
    %v866 = vsel %vm864, %v854, 2102212464
    %v867 = vsel %vm863, %v851, %v866
    %v868 = vsel %vm862, %v865, %v867
    %v869 = vsel %vm861, %v848, %v851
    %v870 = vsel %vm864, %v857, 920167782
    %v871 = vsel %vm863, %v854, %v870
    %v872 = vsel %vm862, %v869, %v871
    %v873 = vsel %vm861, %v851, %v854
    %v874 = vsel %vm864, %v860, 1326507024
    %v875 = vsel %vm863, %v857, %v874
    %v876 = vsel %vm862, %v873, %v875
    %v877 = vshll.u32 %v837, 8
    %v878 = vand.u32 %v877, 65535
    %v879 = vshrl.u32 %v877, 16
    %v880 = vand.u32 %v876, 65535
    %v881 = vshrl.u32 %v876, 16
    %v882 = vmul.u32 %v878, %v880
    %v883 = vmul.u32 %v878, %v881
    %v884 = vmul.u32 %v879, %v880
    %v885 = vmul.u32 %v879, %v881
    %v886 = vshll.u32 %v883, 16
    %v887 = vshrl.u32 %v883, 16
    %v888 = vshll.u32 %v884, 16
    %v889 = vshrl.u32 %v884, 16
    %vm890 = vc.u32 %v882, %v886
    %v891 = vsel %vm890, 1, 0
    %v892 = vadd.s32 %v882, %v886
    %v893 = vadd.s32 %v885, %v891
    %vm894 = vc.u32 %v892, %v888
    %v895 = vsel %vm894, 1, 0
    %v896 = vadd.s32 %v892, %v888
    %v897 = vadd.s32 %v893, %v895
    %v898 = vadd.s32 %v897, %v887
    %v899 = vadd.s32 %v898, %v889
    %v900 = vand.u32 %v877, 65535
    %v901 = vshrl.u32 %v877, 16
    %v902 = vand.u32 %v872, 65535
    %v903 = vshrl.u32 %v872, 16
    %v904 = vmul.u32 %v900, %v902
    %v905 = vmul.u32 %v900, %v903
    %v906 = vmul.u32 %v901, %v902
    %v907 = vmul.u32 %v901, %v903
    %v908 = vshll.u32 %v905, 16
    %v909 = vshrl.u32 %v905, 16
    %v910 = vshll.u32 %v906, 16
    %v911 = vshrl.u32 %v906, 16
    %vm912 = vc.u32 %v904, %v908
    %v913 = vsel %vm912, 1, 0
    %v914 = vadd.s32 %v904, %v908
    %v915 = vadd.s32 %v907, %v913
    %vm916 = vc.u32 %v914, %v910
    %v917 = vsel %vm916, 1, 0
    %v918 = vadd.s32 %v914, %v910
    %v919 = vadd.s32 %v915, %v917
    %v920 = vadd.s32 %v919, %v909
    %v921 = vadd.s32 %v920, %v911
    %v922 = vmul.u32 %v877, %v868
    %v923 = vadd.s32 %v899, %v918
    %vm924 = vc.u32 %v899, %v918
    %v925 = vadd.s32 %v921, 1
    %v926 = vsel %vm924, %v925, %v921
    %v927 = vadd.s32 %v922, %v926
    %v928 = vadd.s32 %v927, 536870912
    %v929 = vshrl.u32 %v928, 30
    %v930 = vshll.u32 %v929, 30
    %v931 = vsub.s32 %v927, %v930
    %vm932 = vcmp.lt.s32.totalorder %v931, 0
    %v933 = vsub.s32 0, %v931
    %v934 = vsel %vm932, %v933, %v931
    %v935 = vclz %v934
    %v936 = vsub.s32 %v935, 2
    %vm937 = vcmp.gt.s32.totalorder 0, %v936
    %v938 = vsel %vm937, 0, %v936
    %v939 = vsub.s32 32, %v938
    %v940 = vshll.u32 %v931, %v938
    %v941 = vshrl.u32 %v923, %v939
    %v942 = vor.u32 %v940, %v941
    %v943 = vsub.s32 4294967266, %v938
    %v944 = vadd.s32 %v943, 127
    %v945 = vshll.u32 %v944, 23
    %v946 = vor.u32 4788187, %v945
    %v947 = vand.u32 2147483647, %v946
    %v949 = vcvt.s32.f32 %v942
    %v950 = vmul.f32 %v949, %v947
    %v951 = vxor.u32 %v950, 2147483648
    %v952 = vsel %vm831, %v951, %v950
    %v953 = vsub.s32 4, %v929
    %v954 = vsel %vm831, %v953, %v929
    %v955 = vsel %vm830, %v828, %v952
    %v956 = vsel %vm830, 0, %v954
    %v957 = vmul.f32 %v955, %v955
    %v958 = vmul.f32 %v957, -0.001358992
    %v959 = vadd.f32 %v958, 0.041655596
    %v960 = vmul.f32 %v957, %v959
    %v961 = vadd.f32 %v960, -0.4999988
    %v962 = vmul.f32 %v957, %v961
    %v963 = vadd.f32 1.0, %v962
    %v964 = vmul.f32 %v955, %v955
    %v965 = vmul.f32 %v964, -0.00019511016
    %v966 = vadd.f32 %v965, 0.008332121
    %v967 = vmul.f32 %v964, %v966
    %v968 = vadd.f32 %v967, -0.16666654
    %v969 = vmul.f32 %v964, %v968
    %v970 = vadd.f32 %v969, 1.0
    %v971 = vmul.f32 %v970, %v955
    %vm972 = vweird.f32 %v828
    %v973 = vand.u32 %v956, 3
    %vm974 = vcmp.lt.s32.totalorder %v973, 2
    %vm975 = vcmp.eq.s32.totalorder %v973, 0
    %v976 = vxor.u32 %v971, 2147483648
    %v977 = vsel %vm975, %v963, %v976
    %vm978 = vcmp.eq.s32.totalorder %v973, 2
    %v979 = vxor.u32 %v963, 2147483648
    %v980 = vsel %vm978, %v979, %v971
    %v981 = vsel %vm974, %v977, %v980
    %v982 = vsel %vm972, nan, %v981
    %v983 = vmul.f32 %v826, %v982
    %v984 = vmul.f32 %v983, %v450
    %s985 = scalar_lea.vmem [#allocation14], 16
    %986 = vst [vmem:[%s985] sm:$0xff] %v984
    %s987 = sld [smem:[#allocation2 + $0x3]]
    %s988 = sld [smem:[#allocation6 + $0x3]]
    %v989 = vstv %s987
    %v990 = vmul.f32 %v989, %v261
    %v991 = vstv %s988
    %v992 = vmul.f32 %v991, %v416
    %v993 = vadd.f32 %v990, %v992
    %s994 = ssub.f32 0.0, %s987
    %v995 = vstv %s994
    %v996 = vmul.f32 %v995, %v416
    %v997 = vmul.f32 %v991, %v261
    %v998 = vadd.f32 %v996, %v997
    %v999 = vmul.f32 %v993, %v993
    %v1000 = vmul.f32 %v998, %v998
    %v1001 = vadd.f32 %v999, %v1000
    %v1002 = vmul.f32 %v1001, -0.5
    %v1003 = vmul.f32 %v1002, %v433
    %v1004 = vmul.f32 %v1003, 1.442695
    %v1005 = vpow.pop %v1004
    %v1006 = vmul.f32 %v104, %v993
    %v1007 = vadd.f32 %v1006, %v107
    %v1008 = vand.u32 2147483647, %v1007
    %vm1009 = vcmp.le.f32.partialorder %v1008, 0.7853982
    %vm1010 = vcmp.lt.s32.totalorder %v1007, 0
    %v1011 = vand.u32 %v1007, 2139095040
    %v1012 = vshrl.u32 %v1011, 23
    %v1013 = vsub.s32 %v1012, 127
    %v1014 = vand.u32 2147483647, %v1007
    %v1015 = vand.u32 %v1014, 8388607
    %v1016 = vor.u32 %v1015, 8388608
    %v1017 = vsub.s32 0, %v1016
    %v1018 = vadd.s32 %v1013, 1
    %vm1019 = vcmp.gt.s32.totalorder %v1018, 0
    %v1020 = vsel %vm1019, %v1018, 0
    %v1021 = vshrl.u32 %v1020, 5
    %v1022 = vand.u32 %v1020, 31
    %v1023 = vsub.s32 32, %v1022
    %v1024 = vshrl.u32 683565275, %v1023
    %v1025 = vshll.u32 683565275, %v1022
    %v1026 = vshrl.u32 2475754826, %v1023
    %v1027 = vor.u32 %v1025, %v1026
    %v1028 = vshll.u32 2475754826, %v1022
    %v1029 = vshrl.u32 2131351028, %v1023
    %v1030 = vor.u32 %v1028, %v1029
    %v1031 = vshll.u32 2131351028, %v1022
    %v1032 = vshrl.u32 2102212464, %v1023
    %v1033 = vor.u32 %v1031, %v1032
    %v1034 = vshll.u32 2102212464, %v1022
    %v1035 = vshrl.u32 920167782, %v1023
    %v1036 = vor.u32 %v1034, %v1035
    %v1037 = vshll.u32 920167782, %v1022
    %v1038 = vshrl.u32 1326507024, %v1023
    %v1039 = vor.u32 %v1037, %v1038
    %vm1040 = vcmp.lt.s32.totalorder %v1021, 1
    %vm1041 = vcmp.lt.s32.totalorder %v1021, 2
    %vm1042 = vcmp.lt.s32.totalorder %v1021, 3
    %vm1043 = vcmp.lt.s32.totalorder %v1021, 4
    %v1044 = vsel %vm1040, %v1024, %v1027
    %v1045 = vsel %vm1043, %v1033, 2102212464
    %v1046 = vsel %vm1042, %v1030, %v1045
    %v1047 = vsel %vm1041, %v1044, %v1046
    %v1048 = vsel %vm1040, %v1027, %v1030
    %v1049 = vsel %vm1043, %v1036, 920167782
    %v1050 = vsel %vm1042, %v1033, %v1049
    %v1051 = vsel %vm1041, %v1048, %v1050
    %v1052 = vsel %vm1040, %v1030, %v1033
    %v1053 = vsel %vm1043, %v1039, 1326507024
    %v1054 = vsel %vm1042, %v1036, %v1053
    %v1055 = vsel %vm1041, %v1052, %v1054
    %v1056 = vshll.u32 %v1016, 8
    %v1057 = vand.u32 %v1056, 65535
    %v1058 = vshrl.u32 %v1056, 16
    %v1059 = vand.u32 %v1055, 65535
    %v1060 = vshrl.u32 %v1055, 16
    %v1061 = vmul.u32 %v1057, %v1059
    %v1062 = vmul.u32 %v1057, %v1060
    %v1063 = vmul.u32 %v1058, %v1059
    %v1064 = vmul.u32 %v1058, %v1060
    %v1065 = vshll.u32 %v1062, 16
    %v1066 = vshrl.u32 %v1062, 16
    %v1067 = vshll.u32 %v1063, 16
    %v1068 = vshrl.u32 %v1063, 16
    %vm1069 = vc.u32 %v1061, %v1065
    %v1070 = vsel %vm1069, 1, 0
    %v1071 = vadd.s32 %v1061, %v1065
    %v1072 = vadd.s32 %v1064, %v1070
    %vm1073 = vc.u32 %v1071, %v1067
    %v1074 = vsel %vm1073, 1, 0
    %v1075 = vadd.s32 %v1071, %v1067
    %v1076 = vadd.s32 %v1072, %v1074
    %v1077 = vadd.s32 %v1076, %v1066
    %v1078 = vadd.s32 %v1077, %v1068
    %v1079 = vand.u32 %v1056, 65535
    %v1080 = vshrl.u32 %v1056, 16
    %v1081 = vand.u32 %v1051, 65535
    %v1082 = vshrl.u32 %v1051, 16
    %v1083 = vmul.u32 %v1079, %v1081
    %v1084 = vmul.u32 %v1079, %v1082
    %v1085 = vmul.u32 %v1080, %v1081
    %v1086 = vmul.u32 %v1080, %v1082
    %v1087 = vshll.u32 %v1084, 16
    %v1088 = vshrl.u32 %v1084, 16
    %v1089 = vshll.u32 %v1085, 16
    %v1090 = vshrl.u32 %v1085, 16
    %vm1091 = vc.u32 %v1083, %v1087
    %v1092 = vsel %vm1091, 1, 0
    %v1093 = vadd.s32 %v1083, %v1087
    %v1094 = vadd.s32 %v1086, %v1092
    %vm1095 = vc.u32 %v1093, %v1089
    %v1096 = vsel %vm1095, 1, 0
    %v1097 = vadd.s32 %v1093, %v1089
    %v1098 = vadd.s32 %v1094, %v1096
    %v1099 = vadd.s32 %v1098, %v1088
    %v1100 = vadd.s32 %v1099, %v1090
    %v1101 = vmul.u32 %v1056, %v1047
    %v1102 = vadd.s32 %v1078, %v1097
    %vm1103 = vc.u32 %v1078, %v1097
    %v1104 = vadd.s32 %v1100, 1
    %v1105 = vsel %vm1103, %v1104, %v1100
    %v1106 = vadd.s32 %v1101, %v1105
    %v1107 = vadd.s32 %v1106, 536870912
    %v1108 = vshrl.u32 %v1107, 30
    %v1109 = vshll.u32 %v1108, 30
    %v1110 = vsub.s32 %v1106, %v1109
    %vm1111 = vcmp.lt.s32.totalorder %v1110, 0
    %v1112 = vsub.s32 0, %v1110
    %v1113 = vsel %vm1111, %v1112, %v1110
    %v1114 = vclz %v1113
    %v1115 = vsub.s32 %v1114, 2
    %vm1116 = vcmp.gt.s32.totalorder 0, %v1115
    %v1117 = vsel %vm1116, 0, %v1115
    %v1118 = vsub.s32 32, %v1117
    %v1119 = vshll.u32 %v1110, %v1117
    %v1120 = vshrl.u32 %v1102, %v1118
    %v1121 = vor.u32 %v1119, %v1120
    %v1122 = vsub.s32 4294967266, %v1117
    %v1123 = vadd.s32 %v1122, 127
    %v1124 = vshll.u32 %v1123, 23
    %v1125 = vor.u32 4788187, %v1124
    %v1126 = vand.u32 2147483647, %v1125
    %v1128 = vcvt.s32.f32 %v1121
    %v1129 = vmul.f32 %v1128, %v1126
    %v1130 = vxor.u32 %v1129, 2147483648
    %v1131 = vsel %vm1010, %v1130, %v1129
    %v1132 = vsub.s32 4, %v1108
    %v1133 = vsel %vm1010, %v1132, %v1108
    %v1134 = vsel %vm1009, %v1007, %v1131
    %v1135 = vsel %vm1009, 0, %v1133
    %v1136 = vmul.f32 %v1134, %v1134
    %v1137 = vmul.f32 %v1136, -0.001358992
    %v1138 = vadd.f32 %v1137, 0.041655596
    %v1139 = vmul.f32 %v1136, %v1138
    %v1140 = vadd.f32 %v1139, -0.4999988
    %v1141 = vmul.f32 %v1136, %v1140
    %v1142 = vadd.f32 1.0, %v1141
    %v1143 = vmul.f32 %v1134, %v1134
    %v1144 = vmul.f32 %v1143, -0.00019511016
    %v1145 = vadd.f32 %v1144, 0.008332121
    %v1146 = vmul.f32 %v1143, %v1145
    %v1147 = vadd.f32 %v1146, -0.16666654
    %v1148 = vmul.f32 %v1143, %v1147
    %v1149 = vadd.f32 %v1148, 1.0
    %v1150 = vmul.f32 %v1149, %v1134
    %vm1151 = vweird.f32 %v1007
    %v1152 = vand.u32 %v1135, 3
    %vm1153 = vcmp.lt.s32.totalorder %v1152, 2
    %vm1154 = vcmp.eq.s32.totalorder %v1152, 0
    %v1155 = vxor.u32 %v1150, 2147483648
    %v1156 = vsel %vm1154, %v1142, %v1155
    %vm1157 = vcmp.eq.s32.totalorder %v1152, 2
    %v1158 = vxor.u32 %v1142, 2147483648
    %v1159 = vsel %vm1157, %v1158, %v1150
    %v1160 = vsel %vm1153, %v1156, %v1159
    %v1161 = vsel %vm1151, nan, %v1160
    %v1162 = vmul.f32 %v1005, %v1161
    %v1163 = vmul.f32 %v1162, %v450
    %s1164 = scalar_lea.vmem [#allocation14], 24
    %1165 = vst [vmem:[%s1164] sm:$0xff] %v1163
    %s1166 = sld [smem:[#allocation2 + $0x4]]
    %s1167 = sld [smem:[#allocation6 + $0x4]]
    %v1168 = vstv %s1166
    %v1169 = vmul.f32 %v1168, %v261
    %v1170 = vstv %s1167
    %v1171 = vmul.f32 %v1170, %v416
    %v1172 = vadd.f32 %v1169, %v1171
    %s1173 = ssub.f32 0.0, %s1166
    %v1174 = vstv %s1173
    %v1175 = vmul.f32 %v1174, %v416
    %v1176 = vmul.f32 %v1170, %v261
    %v1177 = vadd.f32 %v1175, %v1176
    %v1178 = vmul.f32 %v1172, %v1172
    %v1179 = vmul.f32 %v1177, %v1177
    %v1180 = vadd.f32 %v1178, %v1179
    %v1181 = vmul.f32 %v1180, -0.5
    %v1182 = vmul.f32 %v1181, %v433
    %v1183 = vmul.f32 %v1182, 1.442695
    %v1184 = vpow.pop %v1183
    %v1185 = vmul.f32 %v104, %v1172
    %v1186 = vadd.f32 %v1185, %v107
    %v1187 = vand.u32 2147483647, %v1186
    %vm1188 = vcmp.le.f32.partialorder %v1187, 0.7853982
    %vm1189 = vcmp.lt.s32.totalorder %v1186, 0
    %v1190 = vand.u32 %v1186, 2139095040
    %v1191 = vshrl.u32 %v1190, 23
    %v1192 = vsub.s32 %v1191, 127
    %v1193 = vand.u32 2147483647, %v1186
    %v1194 = vand.u32 %v1193, 8388607
    %v1195 = vor.u32 %v1194, 8388608
    %v1196 = vsub.s32 0, %v1195
    %v1197 = vadd.s32 %v1192, 1
    %vm1198 = vcmp.gt.s32.totalorder %v1197, 0
    %v1199 = vsel %vm1198, %v1197, 0
    %v1200 = vshrl.u32 %v1199, 5
    %v1201 = vand.u32 %v1199, 31
    %v1202 = vsub.s32 32, %v1201
    %v1203 = vshrl.u32 683565275, %v1202
    %v1204 = vshll.u32 683565275, %v1201
    %v1205 = vshrl.u32 2475754826, %v1202
    %v1206 = vor.u32 %v1204, %v1205
    %v1207 = vshll.u32 2475754826, %v1201
    %v1208 = vshrl.u32 2131351028, %v1202
    %v1209 = vor.u32 %v1207, %v1208
    %v1210 = vshll.u32 2131351028, %v1201
    %v1211 = vshrl.u32 2102212464, %v1202
    %v1212 = vor.u32 %v1210, %v1211
    %v1213 = vshll.u32 2102212464, %v1201
    %v1214 = vshrl.u32 920167782, %v1202
    %v1215 = vor.u32 %v1213, %v1214
    %v1216 = vshll.u32 920167782, %v1201
    %v1217 = vshrl.u32 1326507024, %v1202
    %v1218 = vor.u32 %v1216, %v1217
    %vm1219 = vcmp.lt.s32.totalorder %v1200, 1
    %vm1220 = vcmp.lt.s32.totalorder %v1200, 2
    %vm1221 = vcmp.lt.s32.totalorder %v1200, 3
    %vm1222 = vcmp.lt.s32.totalorder %v1200, 4
    %v1223 = vsel %vm1219, %v1203, %v1206
    %v1224 = vsel %vm1222, %v1212, 2102212464
    %v1225 = vsel %vm1221, %v1209, %v1224
    %v1226 = vsel %vm1220, %v1223, %v1225
    %v1227 = vsel %vm1219, %v1206, %v1209
    %v1228 = vsel %vm1222, %v1215, 920167782
    %v1229 = vsel %vm1221, %v1212, %v1228
    %v1230 = vsel %vm1220, %v1227, %v1229
    %v1231 = vsel %vm1219, %v1209, %v1212
    %v1232 = vsel %vm1222, %v1218, 1326507024
    %v1233 = vsel %vm1221, %v1215, %v1232
    %v1234 = vsel %vm1220, %v1231, %v1233
    %v1235 = vshll.u32 %v1195, 8
    %v1236 = vand.u32 %v1235, 65535
    %v1237 = vshrl.u32 %v1235, 16
    %v1238 = vand.u32 %v1234, 65535
    %v1239 = vshrl.u32 %v1234, 16
    %v1240 = vmul.u32 %v1236, %v1238
    %v1241 = vmul.u32 %v1236, %v1239
    %v1242 = vmul.u32 %v1237, %v1238
    %v1243 = vmul.u32 %v1237, %v1239
    %v1244 = vshll.u32 %v1241, 16
    %v1245 = vshrl.u32 %v1241, 16
    %v1246 = vshll.u32 %v1242, 16
    %v1247 = vshrl.u32 %v1242, 16
    %vm1248 = vc.u32 %v1240, %v1244
    %v1249 = vsel %vm1248, 1, 0
    %v1250 = vadd.s32 %v1240, %v1244
    %v1251 = vadd.s32 %v1243, %v1249
    %vm1252 = vc.u32 %v1250, %v1246
    %v1253 = vsel %vm1252, 1, 0
    %v1254 = vadd.s32 %v1250, %v1246
    %v1255 = vadd.s32 %v1251, %v1253
    %v1256 = vadd.s32 %v1255, %v1245
    %v1257 = vadd.s32 %v1256, %v1247
    %v1258 = vand.u32 %v1235, 65535
    %v1259 = vshrl.u32 %v1235, 16
    %v1260 = vand.u32 %v1230, 65535
    %v1261 = vshrl.u32 %v1230, 16
    %v1262 = vmul.u32 %v1258, %v1260
    %v1263 = vmul.u32 %v1258, %v1261
    %v1264 = vmul.u32 %v1259, %v1260
    %v1265 = vmul.u32 %v1259, %v1261
    %v1266 = vshll.u32 %v1263, 16
    %v1267 = vshrl.u32 %v1263, 16
    %v1268 = vshll.u32 %v1264, 16
    %v1269 = vshrl.u32 %v1264, 16
    %vm1270 = vc.u32 %v1262, %v1266
    %v1271 = vsel %vm1270, 1, 0
    %v1272 = vadd.s32 %v1262, %v1266
    %v1273 = vadd.s32 %v1265, %v1271
    %vm1274 = vc.u32 %v1272, %v1268
    %v1275 = vsel %vm1274, 1, 0
    %v1276 = vadd.s32 %v1272, %v1268
    %v1277 = vadd.s32 %v1273, %v1275
    %v1278 = vadd.s32 %v1277, %v1267
    %v1279 = vadd.s32 %v1278, %v1269
    %v1280 = vmul.u32 %v1235, %v1226
    %v1281 = vadd.s32 %v1257, %v1276
    %vm1282 = vc.u32 %v1257, %v1276
    %v1283 = vadd.s32 %v1279, 1
    %v1284 = vsel %vm1282, %v1283, %v1279
    %v1285 = vadd.s32 %v1280, %v1284
    %v1286 = vadd.s32 %v1285, 536870912
    %v1287 = vshrl.u32 %v1286, 30
    %v1288 = vshll.u32 %v1287, 30
    %v1289 = vsub.s32 %v1285, %v1288
    %vm1290 = vcmp.lt.s32.totalorder %v1289, 0
    %v1291 = vsub.s32 0, %v1289
    %v1292 = vsel %vm1290, %v1291, %v1289
    %v1293 = vclz %v1292
    %v1294 = vsub.s32 %v1293, 2
    %vm1295 = vcmp.gt.s32.totalorder 0, %v1294
    %v1296 = vsel %vm1295, 0, %v1294
    %v1297 = vsub.s32 32, %v1296
    %v1298 = vshll.u32 %v1289, %v1296
    %v1299 = vshrl.u32 %v1281, %v1297
    %v1300 = vor.u32 %v1298, %v1299
    %v1301 = vsub.s32 4294967266, %v1296
    %v1302 = vadd.s32 %v1301, 127
    %v1303 = vshll.u32 %v1302, 23
    %v1304 = vor.u32 4788187, %v1303
    %v1305 = vand.u32 2147483647, %v1304
    %v1307 = vcvt.s32.f32 %v1300
    %v1308 = vmul.f32 %v1307, %v1305
    %v1309 = vxor.u32 %v1308, 2147483648
    %v1310 = vsel %vm1189, %v1309, %v1308
    %v1311 = vsub.s32 4, %v1287
    %v1312 = vsel %vm1189, %v1311, %v1287
    %v1313 = vsel %vm1188, %v1186, %v1310
    %v1314 = vsel %vm1188, 0, %v1312
    %v1315 = vmul.f32 %v1313, %v1313
    %v1316 = vmul.f32 %v1315, -0.001358992
    %v1317 = vadd.f32 %v1316, 0.041655596
    %v1318 = vmul.f32 %v1315, %v1317
    %v1319 = vadd.f32 %v1318, -0.4999988
    %v1320 = vmul.f32 %v1315, %v1319
    %v1321 = vadd.f32 1.0, %v1320
    %v1322 = vmul.f32 %v1313, %v1313
    %v1323 = vmul.f32 %v1322, -0.00019511016
    %v1324 = vadd.f32 %v1323, 0.008332121
    %v1325 = vmul.f32 %v1322, %v1324
    %v1326 = vadd.f32 %v1325, -0.16666654
    %v1327 = vmul.f32 %v1322, %v1326
    %v1328 = vadd.f32 %v1327, 1.0
    %v1329 = vmul.f32 %v1328, %v1313
    %vm1330 = vweird.f32 %v1186
    %v1331 = vand.u32 %v1314, 3
    %vm1332 = vcmp.lt.s32.totalorder %v1331, 2
    %vm1333 = vcmp.eq.s32.totalorder %v1331, 0
    %v1334 = vxor.u32 %v1329, 2147483648
    %v1335 = vsel %vm1333, %v1321, %v1334
    %vm1336 = vcmp.eq.s32.totalorder %v1331, 2
    %v1337 = vxor.u32 %v1321, 2147483648
    %v1338 = vsel %vm1336, %v1337, %v1329
    %v1339 = vsel %vm1332, %v1335, %v1338
    %v1340 = vsel %vm1330, nan, %v1339
    %v1341 = vmul.f32 %v1184, %v1340
    %v1342 = vmul.f32 %v1341, %v450
    %s1343 = scalar_lea.vmem [#allocation14], 32
    %1344 = vst [vmem:[%s1343] sm:$0xff] %v1342
    %s1345 = sld [smem:[#allocation2 + $0x5]]
    %s1346 = sld [smem:[#allocation6 + $0x5]]
    %v1347 = vstv %s1345
    %v1348 = vmul.f32 %v1347, %v261
    %v1349 = vstv %s1346
    %v1350 = vmul.f32 %v1349, %v416
    %v1351 = vadd.f32 %v1348, %v1350
    %s1352 = ssub.f32 0.0, %s1345
    %v1353 = vstv %s1352
    %v1354 = vmul.f32 %v1353, %v416
    %v1355 = vmul.f32 %v1349, %v261
    %v1356 = vadd.f32 %v1354, %v1355
    %v1357 = vmul.f32 %v1351, %v1351
    %v1358 = vmul.f32 %v1356, %v1356
    %v1359 = vadd.f32 %v1357, %v1358
    %v1360 = vmul.f32 %v1359, -0.5
    %v1361 = vmul.f32 %v1360, %v433
    %v1362 = vmul.f32 %v1361, 1.442695
    %v1363 = vpow.pop %v1362
    %v1364 = vmul.f32 %v104, %v1351
    %v1365 = vadd.f32 %v1364, %v107
    %v1366 = vand.u32 2147483647, %v1365
    %vm1367 = vcmp.le.f32.partialorder %v1366, 0.7853982
    %vm1368 = vcmp.lt.s32.totalorder %v1365, 0
    %v1369 = vand.u32 %v1365, 2139095040
    %v1370 = vshrl.u32 %v1369, 23
    %v1371 = vsub.s32 %v1370, 127
    %v1372 = vand.u32 2147483647, %v1365
    %v1373 = vand.u32 %v1372, 8388607
    %v1374 = vor.u32 %v1373, 8388608
    %v1375 = vsub.s32 0, %v1374
    %v1376 = vadd.s32 %v1371, 1
    %vm1377 = vcmp.gt.s32.totalorder %v1376, 0
    %v1378 = vsel %vm1377, %v1376, 0
    %v1379 = vshrl.u32 %v1378, 5
    %v1380 = vand.u32 %v1378, 31
    %v1381 = vsub.s32 32, %v1380
    %v1382 = vshrl.u32 683565275, %v1381
    %v1383 = vshll.u32 683565275, %v1380
    %v1384 = vshrl.u32 2475754826, %v1381
    %v1385 = vor.u32 %v1383, %v1384
    %v1386 = vshll.u32 2475754826, %v1380
    %v1387 = vshrl.u32 2131351028, %v1381
    %v1388 = vor.u32 %v1386, %v1387
    %v1389 = vshll.u32 2131351028, %v1380
    %v1390 = vshrl.u32 2102212464, %v1381
    %v1391 = vor.u32 %v1389, %v1390
    %v1392 = vshll.u32 2102212464, %v1380
    %v1393 = vshrl.u32 920167782, %v1381
    %v1394 = vor.u32 %v1392, %v1393
    %v1395 = vshll.u32 920167782, %v1380
    %v1396 = vshrl.u32 1326507024, %v1381
    %v1397 = vor.u32 %v1395, %v1396
    %vm1398 = vcmp.lt.s32.totalorder %v1379, 1
    %vm1399 = vcmp.lt.s32.totalorder %v1379, 2
    %vm1400 = vcmp.lt.s32.totalorder %v1379, 3
    %vm1401 = vcmp.lt.s32.totalorder %v1379, 4
    %v1402 = vsel %vm1398, %v1382, %v1385
    %v1403 = vsel %vm1401, %v1391, 2102212464
    %v1404 = vsel %vm1400, %v1388, %v1403
    %v1405 = vsel %vm1399, %v1402, %v1404
    %v1406 = vsel %vm1398, %v1385, %v1388
    %v1407 = vsel %vm1401, %v1394, 920167782
    %v1408 = vsel %vm1400, %v1391, %v1407
    %v1409 = vsel %vm1399, %v1406, %v1408
    %v1410 = vsel %vm1398, %v1388, %v1391
    %v1411 = vsel %vm1401, %v1397, 1326507024
    %v1412 = vsel %vm1400, %v1394, %v1411
    %v1413 = vsel %vm1399, %v1410, %v1412
    %v1414 = vshll.u32 %v1374, 8
    %v1415 = vand.u32 %v1414, 65535
    %v1416 = vshrl.u32 %v1414, 16
    %v1417 = vand.u32 %v1413, 65535
    %v1418 = vshrl.u32 %v1413, 16
    %v1419 = vmul.u32 %v1415, %v1417
    %v1420 = vmul.u32 %v1415, %v1418
    %v1421 = vmul.u32 %v1416, %v1417
    %v1422 = vmul.u32 %v1416, %v1418
    %v1423 = vshll.u32 %v1420, 16
    %v1424 = vshrl.u32 %v1420, 16
    %v1425 = vshll.u32 %v1421, 16
    %v1426 = vshrl.u32 %v1421, 16
    %vm1427 = vc.u32 %v1419, %v1423
    %v1428 = vsel %vm1427, 1, 0
    %v1429 = vadd.s32 %v1419, %v1423
    %v1430 = vadd.s32 %v1422, %v1428
    %vm1431 = vc.u32 %v1429, %v1425
    %v1432 = vsel %vm1431, 1, 0
    %v1433 = vadd.s32 %v1429, %v1425
    %v1434 = vadd.s32 %v1430, %v1432
    %v1435 = vadd.s32 %v1434, %v1424
    %v1436 = vadd.s32 %v1435, %v1426
    %v1437 = vand.u32 %v1414, 65535
    %v1438 = vshrl.u32 %v1414, 16
    %v1439 = vand.u32 %v1409, 65535
    %v1440 = vshrl.u32 %v1409, 16
    %v1441 = vmul.u32 %v1437, %v1439
    %v1442 = vmul.u32 %v1437, %v1440
    %v1443 = vmul.u32 %v1438, %v1439
    %v1444 = vmul.u32 %v1438, %v1440
    %v1445 = vshll.u32 %v1442, 16
    %v1446 = vshrl.u32 %v1442, 16
    %v1447 = vshll.u32 %v1443, 16
    %v1448 = vshrl.u32 %v1443, 16
    %vm1449 = vc.u32 %v1441, %v1445
    %v1450 = vsel %vm1449, 1, 0
    %v1451 = vadd.s32 %v1441, %v1445
    %v1452 = vadd.s32 %v1444, %v1450
    %vm1453 = vc.u32 %v1451, %v1447
    %v1454 = vsel %vm1453, 1, 0
    %v1455 = vadd.s32 %v1451, %v1447
    %v1456 = vadd.s32 %v1452, %v1454
    %v1457 = vadd.s32 %v1456, %v1446
    %v1458 = vadd.s32 %v1457, %v1448
    %v1459 = vmul.u32 %v1414, %v1405
    %v1460 = vadd.s32 %v1436, %v1455
    %vm1461 = vc.u32 %v1436, %v1455
    %v1462 = vadd.s32 %v1458, 1
    %v1463 = vsel %vm1461, %v1462, %v1458
    %v1464 = vadd.s32 %v1459, %v1463
    %v1465 = vadd.s32 %v1464, 536870912
    %v1466 = vshrl.u32 %v1465, 30
    %v1467 = vshll.u32 %v1466, 30
    %v1468 = vsub.s32 %v1464, %v1467
    %vm1469 = vcmp.lt.s32.totalorder %v1468, 0
    %v1470 = vsub.s32 0, %v1468
    %v1471 = vsel %vm1469, %v1470, %v1468
    %v1472 = vclz %v1471
    %v1473 = vsub.s32 %v1472, 2
    %vm1474 = vcmp.gt.s32.totalorder 0, %v1473
    %v1475 = vsel %vm1474, 0, %v1473
    %v1476 = vsub.s32 32, %v1475
    %v1477 = vshll.u32 %v1468, %v1475
    %v1478 = vshrl.u32 %v1460, %v1476
    %v1479 = vor.u32 %v1477, %v1478
    %v1480 = vsub.s32 4294967266, %v1475
    %v1481 = vadd.s32 %v1480, 127
    %v1482 = vshll.u32 %v1481, 23
    %v1483 = vor.u32 4788187, %v1482
    %v1484 = vand.u32 2147483647, %v1483
    %v1486 = vcvt.s32.f32 %v1479
    %v1487 = vmul.f32 %v1486, %v1484
    %v1488 = vxor.u32 %v1487, 2147483648
    %v1489 = vsel %vm1368, %v1488, %v1487
    %v1490 = vsub.s32 4, %v1466
    %v1491 = vsel %vm1368, %v1490, %v1466
    %v1492 = vsel %vm1367, %v1365, %v1489
    %v1493 = vsel %vm1367, 0, %v1491
    %v1494 = vmul.f32 %v1492, %v1492
    %v1495 = vmul.f32 %v1494, -0.001358992
    %v1496 = vadd.f32 %v1495, 0.041655596
    %v1497 = vmul.f32 %v1494, %v1496
    %v1498 = vadd.f32 %v1497, -0.4999988
    %v1499 = vmul.f32 %v1494, %v1498
    %v1500 = vadd.f32 1.0, %v1499
    %v1501 = vmul.f32 %v1492, %v1492
    %v1502 = vmul.f32 %v1501, -0.00019511016
    %v1503 = vadd.f32 %v1502, 0.008332121
    %v1504 = vmul.f32 %v1501, %v1503
    %v1505 = vadd.f32 %v1504, -0.16666654
    %v1506 = vmul.f32 %v1501, %v1505
    %v1507 = vadd.f32 %v1506, 1.0
    %v1508 = vmul.f32 %v1507, %v1492
    %vm1509 = vweird.f32 %v1365
    %v1510 = vand.u32 %v1493, 3
    %vm1511 = vcmp.lt.s32.totalorder %v1510, 2
    %vm1512 = vcmp.eq.s32.totalorder %v1510, 0
    %v1513 = vxor.u32 %v1508, 2147483648
    %v1514 = vsel %vm1512, %v1500, %v1513
    %vm1515 = vcmp.eq.s32.totalorder %v1510, 2
    %v1516 = vxor.u32 %v1500, 2147483648
    %v1517 = vsel %vm1515, %v1516, %v1508
    %v1518 = vsel %vm1511, %v1514, %v1517
    %v1519 = vsel %vm1509, nan, %v1518
    %v1520 = vmul.f32 %v1363, %v1519
    %v1521 = vmul.f32 %v1520, %v450
    %s1522 = scalar_lea.vmem [#allocation14], 40
    %1523 = vst [vmem:[%s1522] sm:$0xff] %v1521
    %s1524 = sld [smem:[#allocation2 + $0x6]]
    %s1525 = sld [smem:[#allocation6 + $0x6]]
    %v1526 = vstv %s1524
    %v1527 = vmul.f32 %v1526, %v261
    %v1528 = vstv %s1525
    %v1529 = vmul.f32 %v1528, %v416
    %v1530 = vadd.f32 %v1527, %v1529
    %s1531 = ssub.f32 0.0, %s1524
    %v1532 = vstv %s1531
    %v1533 = vmul.f32 %v1532, %v416
    %v1534 = vmul.f32 %v1528, %v261
    %v1535 = vadd.f32 %v1533, %v1534
    %v1536 = vmul.f32 %v1530, %v1530
    %v1537 = vmul.f32 %v1535, %v1535
    %v1538 = vadd.f32 %v1536, %v1537
    %v1539 = vmul.f32 %v1538, -0.5
    %v1540 = vmul.f32 %v1539, %v433
    %v1541 = vmul.f32 %v1540, 1.442695
    %v1542 = vpow.pop %v1541
    %v1543 = vmul.f32 %v104, %v1530
    %v1544 = vadd.f32 %v1543, %v107
    %v1545 = vand.u32 2147483647, %v1544
    %vm1546 = vcmp.le.f32.partialorder %v1545, 0.7853982
    %vm1547 = vcmp.lt.s32.totalorder %v1544, 0
    %v1548 = vand.u32 %v1544, 2139095040
    %v1549 = vshrl.u32 %v1548, 23
    %v1550 = vsub.s32 %v1549, 127
    %v1551 = vand.u32 2147483647, %v1544
    %v1552 = vand.u32 %v1551, 8388607
    %v1553 = vor.u32 %v1552, 8388608
    %v1554 = vsub.s32 0, %v1553
    %v1555 = vadd.s32 %v1550, 1
    %vm1556 = vcmp.gt.s32.totalorder %v1555, 0
    %v1557 = vsel %vm1556, %v1555, 0
    %v1558 = vshrl.u32 %v1557, 5
    %v1559 = vand.u32 %v1557, 31
    %v1560 = vsub.s32 32, %v1559
    %v1561 = vshrl.u32 683565275, %v1560
    %v1562 = vshll.u32 683565275, %v1559
    %v1563 = vshrl.u32 2475754826, %v1560
    %v1564 = vor.u32 %v1562, %v1563
    %v1565 = vshll.u32 2475754826, %v1559
    %v1566 = vshrl.u32 2131351028, %v1560
    %v1567 = vor.u32 %v1565, %v1566
    %v1568 = vshll.u32 2131351028, %v1559
    %v1569 = vshrl.u32 2102212464, %v1560
    %v1570 = vor.u32 %v1568, %v1569
    %v1571 = vshll.u32 2102212464, %v1559
    %v1572 = vshrl.u32 920167782, %v1560
    %v1573 = vor.u32 %v1571, %v1572
    %v1574 = vshll.u32 920167782, %v1559
    %v1575 = vshrl.u32 1326507024, %v1560
    %v1576 = vor.u32 %v1574, %v1575
    %vm1577 = vcmp.lt.s32.totalorder %v1558, 1
    %vm1578 = vcmp.lt.s32.totalorder %v1558, 2
    %vm1579 = vcmp.lt.s32.totalorder %v1558, 3
    %vm1580 = vcmp.lt.s32.totalorder %v1558, 4
    %v1581 = vsel %vm1577, %v1561, %v1564
    %v1582 = vsel %vm1580, %v1570, 2102212464
    %v1583 = vsel %vm1579, %v1567, %v1582
    %v1584 = vsel %vm1578, %v1581, %v1583
    %v1585 = vsel %vm1577, %v1564, %v1567
    %v1586 = vsel %vm1580, %v1573, 920167782
    %v1587 = vsel %vm1579, %v1570, %v1586
    %v1588 = vsel %vm1578, %v1585, %v1587
    %v1589 = vsel %vm1577, %v1567, %v1570
    %v1590 = vsel %vm1580, %v1576, 1326507024
    %v1591 = vsel %vm1579, %v1573, %v1590
    %v1592 = vsel %vm1578, %v1589, %v1591
    %v1593 = vshll.u32 %v1553, 8
    %v1594 = vand.u32 %v1593, 65535
    %v1595 = vshrl.u32 %v1593, 16
    %v1596 = vand.u32 %v1592, 65535
    %v1597 = vshrl.u32 %v1592, 16
    %v1598 = vmul.u32 %v1594, %v1596
    %v1599 = vmul.u32 %v1594, %v1597
    %v1600 = vmul.u32 %v1595, %v1596
    %v1601 = vmul.u32 %v1595, %v1597
    %v1602 = vshll.u32 %v1599, 16
    %v1603 = vshrl.u32 %v1599, 16
    %v1604 = vshll.u32 %v1600, 16
    %v1605 = vshrl.u32 %v1600, 16
    %vm1606 = vc.u32 %v1598, %v1602
    %v1607 = vsel %vm1606, 1, 0
    %v1608 = vadd.s32 %v1598, %v1602
    %v1609 = vadd.s32 %v1601, %v1607
    %vm1610 = vc.u32 %v1608, %v1604
    %v1611 = vsel %vm1610, 1, 0
    %v1612 = vadd.s32 %v1608, %v1604
    %v1613 = vadd.s32 %v1609, %v1611
    %v1614 = vadd.s32 %v1613, %v1603
    %v1615 = vadd.s32 %v1614, %v1605
    %v1616 = vand.u32 %v1593, 65535
    %v1617 = vshrl.u32 %v1593, 16
    %v1618 = vand.u32 %v1588, 65535
    %v1619 = vshrl.u32 %v1588, 16
    %v1620 = vmul.u32 %v1616, %v1618
    %v1621 = vmul.u32 %v1616, %v1619
    %v1622 = vmul.u32 %v1617, %v1618
    %v1623 = vmul.u32 %v1617, %v1619
    %v1624 = vshll.u32 %v1621, 16
    %v1625 = vshrl.u32 %v1621, 16
    %v1626 = vshll.u32 %v1622, 16
    %v1627 = vshrl.u32 %v1622, 16
    %vm1628 = vc.u32 %v1620, %v1624
    %v1629 = vsel %vm1628, 1, 0
    %v1630 = vadd.s32 %v1620, %v1624
    %v1631 = vadd.s32 %v1623, %v1629
    %vm1632 = vc.u32 %v1630, %v1626
    %v1633 = vsel %vm1632, 1, 0
    %v1634 = vadd.s32 %v1630, %v1626
    %v1635 = vadd.s32 %v1631, %v1633
    %v1636 = vadd.s32 %v1635, %v1625
    %v1637 = vadd.s32 %v1636, %v1627
    %v1638 = vmul.u32 %v1593, %v1584
    %v1639 = vadd.s32 %v1615, %v1634
    %vm1640 = vc.u32 %v1615, %v1634
    %v1641 = vadd.s32 %v1637, 1
    %v1642 = vsel %vm1640, %v1641, %v1637
    %v1643 = vadd.s32 %v1638, %v1642
    %v1644 = vadd.s32 %v1643, 536870912
    %v1645 = vshrl.u32 %v1644, 30
    %v1646 = vshll.u32 %v1645, 30
    %v1647 = vsub.s32 %v1643, %v1646
    %vm1648 = vcmp.lt.s32.totalorder %v1647, 0
    %v1649 = vsub.s32 0, %v1647
    %v1650 = vsel %vm1648, %v1649, %v1647
    %v1651 = vclz %v1650
    %v1652 = vsub.s32 %v1651, 2
    %vm1653 = vcmp.gt.s32.totalorder 0, %v1652
    %v1654 = vsel %vm1653, 0, %v1652
    %v1655 = vsub.s32 32, %v1654
    %v1656 = vshll.u32 %v1647, %v1654
    %v1657 = vshrl.u32 %v1639, %v1655
    %v1658 = vor.u32 %v1656, %v1657
    %v1659 = vsub.s32 4294967266, %v1654
    %v1660 = vadd.s32 %v1659, 127
    %v1661 = vshll.u32 %v1660, 23
    %v1662 = vor.u32 4788187, %v1661
    %v1663 = vand.u32 2147483647, %v1662
    %v1665 = vcvt.s32.f32 %v1658
    %v1666 = vmul.f32 %v1665, %v1663
    %v1667 = vxor.u32 %v1666, 2147483648
    %v1668 = vsel %vm1547, %v1667, %v1666
    %v1669 = vsub.s32 4, %v1645
    %v1670 = vsel %vm1547, %v1669, %v1645
    %v1671 = vsel %vm1546, %v1544, %v1668
    %v1672 = vsel %vm1546, 0, %v1670
    %v1673 = vmul.f32 %v1671, %v1671
    %v1674 = vmul.f32 %v1673, -0.001358992
    %v1675 = vadd.f32 %v1674, 0.041655596
    %v1676 = vmul.f32 %v1673, %v1675
    %v1677 = vadd.f32 %v1676, -0.4999988
    %v1678 = vmul.f32 %v1673, %v1677
    %v1679 = vadd.f32 1.0, %v1678
    %v1680 = vmul.f32 %v1671, %v1671
    %v1681 = vmul.f32 %v1680, -0.00019511016
    %v1682 = vadd.f32 %v1681, 0.008332121
    %v1683 = vmul.f32 %v1680, %v1682
    %v1684 = vadd.f32 %v1683, -0.16666654
    %v1685 = vmul.f32 %v1680, %v1684
    %v1686 = vadd.f32 %v1685, 1.0
    %v1687 = vmul.f32 %v1686, %v1671
    %vm1688 = vweird.f32 %v1544
    %v1689 = vand.u32 %v1672, 3
    %vm1690 = vcmp.lt.s32.totalorder %v1689, 2
    %vm1691 = vcmp.eq.s32.totalorder %v1689, 0
    %v1692 = vxor.u32 %v1687, 2147483648
    %v1693 = vsel %vm1691, %v1679, %v1692
    %vm1694 = vcmp.eq.s32.totalorder %v1689, 2
    %v1695 = vxor.u32 %v1679, 2147483648
    %v1696 = vsel %vm1694, %v1695, %v1687
    %v1697 = vsel %vm1690, %v1693, %v1696
    %v1698 = vsel %vm1688, nan, %v1697
    %v1699 = vmul.f32 %v1542, %v1698
    %v1700 = vmul.f32 %v1699, %v450
    %s1701 = scalar_lea.vmem [#allocation14], 48
    %1702 = vst [vmem:[%s1701] sm:$0xff] %v1700
    %s1703 = sld [smem:[#allocation2 + $0x7]]
    %s1704 = sld [smem:[#allocation6 + $0x7]]
    %v1705 = vstv %s1703
    %v1706 = vmul.f32 %v1705, %v261
    %v1707 = vstv %s1704
    %v1708 = vmul.f32 %v1707, %v416
    %v1709 = vadd.f32 %v1706, %v1708
    %s1710 = ssub.f32 0.0, %s1703
    %v1711 = vstv %s1710
    %v1712 = vmul.f32 %v1711, %v416
    %v1713 = vmul.f32 %v1707, %v261
    %v1714 = vadd.f32 %v1712, %v1713
    %v1715 = vmul.f32 %v1709, %v1709
    %v1716 = vmul.f32 %v1714, %v1714
    %v1717 = vadd.f32 %v1715, %v1716
    %v1718 = vmul.f32 %v1717, -0.5
    %v1719 = vmul.f32 %v1718, %v433
    %v1720 = vmul.f32 %v1719, 1.442695
    %v1721 = vpow.pop %v1720
    %v1722 = vmul.f32 %v104, %v1709
    %v1723 = vadd.f32 %v1722, %v107
    %v1724 = vand.u32 2147483647, %v1723
    %vm1725 = vcmp.le.f32.partialorder %v1724, 0.7853982
    %vm1726 = vcmp.lt.s32.totalorder %v1723, 0
    %v1727 = vand.u32 %v1723, 2139095040
    %v1728 = vshrl.u32 %v1727, 23
    %v1729 = vsub.s32 %v1728, 127
    %v1730 = vand.u32 2147483647, %v1723
    %v1731 = vand.u32 %v1730, 8388607
    %v1732 = vor.u32 %v1731, 8388608
    %v1733 = vsub.s32 0, %v1732
    %v1734 = vadd.s32 %v1729, 1
    %vm1735 = vcmp.gt.s32.totalorder %v1734, 0
    %v1736 = vsel %vm1735, %v1734, 0
    %v1737 = vshrl.u32 %v1736, 5
    %v1738 = vand.u32 %v1736, 31
    %v1739 = vsub.s32 32, %v1738
    %v1740 = vshrl.u32 683565275, %v1739
    %v1741 = vshll.u32 683565275, %v1738
    %v1742 = vshrl.u32 2475754826, %v1739
    %v1743 = vor.u32 %v1741, %v1742
    %v1744 = vshll.u32 2475754826, %v1738
    %v1745 = vshrl.u32 2131351028, %v1739
    %v1746 = vor.u32 %v1744, %v1745
    %v1747 = vshll.u32 2131351028, %v1738
    %v1748 = vshrl.u32 2102212464, %v1739
    %v1749 = vor.u32 %v1747, %v1748
    %v1750 = vshll.u32 2102212464, %v1738
    %v1751 = vshrl.u32 920167782, %v1739
    %v1752 = vor.u32 %v1750, %v1751
    %v1753 = vshll.u32 920167782, %v1738
    %v1754 = vshrl.u32 1326507024, %v1739
    %v1755 = vor.u32 %v1753, %v1754
    %vm1756 = vcmp.lt.s32.totalorder %v1737, 1
    %vm1757 = vcmp.lt.s32.totalorder %v1737, 2
    %vm1758 = vcmp.lt.s32.totalorder %v1737, 3
    %vm1759 = vcmp.lt.s32.totalorder %v1737, 4
    %v1760 = vsel %vm1756, %v1740, %v1743
    %v1761 = vsel %vm1759, %v1749, 2102212464
    %v1762 = vsel %vm1758, %v1746, %v1761
    %v1763 = vsel %vm1757, %v1760, %v1762
    %v1764 = vsel %vm1756, %v1743, %v1746
    %v1765 = vsel %vm1759, %v1752, 920167782
    %v1766 = vsel %vm1758, %v1749, %v1765
    %v1767 = vsel %vm1757, %v1764, %v1766
    %v1768 = vsel %vm1756, %v1746, %v1749
    %v1769 = vsel %vm1759, %v1755, 1326507024
    %v1770 = vsel %vm1758, %v1752, %v1769
    %v1771 = vsel %vm1757, %v1768, %v1770
    %v1772 = vshll.u32 %v1732, 8
    %v1773 = vand.u32 %v1772, 65535
    %v1774 = vshrl.u32 %v1772, 16
    %v1775 = vand.u32 %v1771, 65535
    %v1776 = vshrl.u32 %v1771, 16
    %v1777 = vmul.u32 %v1773, %v1775
    %v1778 = vmul.u32 %v1773, %v1776
    %v1779 = vmul.u32 %v1774, %v1775
    %v1780 = vmul.u32 %v1774, %v1776
    %v1781 = vshll.u32 %v1778, 16
    %v1782 = vshrl.u32 %v1778, 16
    %v1783 = vshll.u32 %v1779, 16
    %v1784 = vshrl.u32 %v1779, 16
    %vm1785 = vc.u32 %v1777, %v1781
    %v1786 = vsel %vm1785, 1, 0
    %v1787 = vadd.s32 %v1777, %v1781
    %v1788 = vadd.s32 %v1780, %v1786
    %vm1789 = vc.u32 %v1787, %v1783
    %v1790 = vsel %vm1789, 1, 0
    %v1791 = vadd.s32 %v1787, %v1783
    %v1792 = vadd.s32 %v1788, %v1790
    %v1793 = vadd.s32 %v1792, %v1782
    %v1794 = vadd.s32 %v1793, %v1784
    %v1795 = vand.u32 %v1772, 65535
    %v1796 = vshrl.u32 %v1772, 16
    %v1797 = vand.u32 %v1767, 65535
    %v1798 = vshrl.u32 %v1767, 16
    %v1799 = vmul.u32 %v1795, %v1797
    %v1800 = vmul.u32 %v1795, %v1798
    %v1801 = vmul.u32 %v1796, %v1797
    %v1802 = vmul.u32 %v1796, %v1798
    %v1803 = vshll.u32 %v1800, 16
    %v1804 = vshrl.u32 %v1800, 16
    %v1805 = vshll.u32 %v1801, 16
    %v1806 = vshrl.u32 %v1801, 16
    %vm1807 = vc.u32 %v1799, %v1803
    %v1808 = vsel %vm1807, 1, 0
    %v1809 = vadd.s32 %v1799, %v1803
    %v1810 = vadd.s32 %v1802, %v1808
    %vm1811 = vc.u32 %v1809, %v1805
    %v1812 = vsel %vm1811, 1, 0
    %v1813 = vadd.s32 %v1809, %v1805
    %v1814 = vadd.s32 %v1810, %v1812
    %v1815 = vadd.s32 %v1814, %v1804
    %v1816 = vadd.s32 %v1815, %v1806
    %v1817 = vmul.u32 %v1772, %v1763
    %v1818 = vadd.s32 %v1794, %v1813
    %vm1819 = vc.u32 %v1794, %v1813
    %v1820 = vadd.s32 %v1816, 1
    %v1821 = vsel %vm1819, %v1820, %v1816
    %v1822 = vadd.s32 %v1817, %v1821
    %v1823 = vadd.s32 %v1822, 536870912
    %v1824 = vshrl.u32 %v1823, 30
    %v1825 = vshll.u32 %v1824, 30
    %v1826 = vsub.s32 %v1822, %v1825
    %vm1827 = vcmp.lt.s32.totalorder %v1826, 0
    %v1828 = vsub.s32 0, %v1826
    %v1829 = vsel %vm1827, %v1828, %v1826
    %v1830 = vclz %v1829
    %v1831 = vsub.s32 %v1830, 2
    %vm1832 = vcmp.gt.s32.totalorder 0, %v1831
    %v1833 = vsel %vm1832, 0, %v1831
    %v1834 = vsub.s32 32, %v1833
    %v1835 = vshll.u32 %v1826, %v1833
    %v1836 = vshrl.u32 %v1818, %v1834
    %v1837 = vor.u32 %v1835, %v1836
    %v1838 = vsub.s32 4294967266, %v1833
    %v1839 = vadd.s32 %v1838, 127
    %v1840 = vshll.u32 %v1839, 23
    %v1841 = vor.u32 4788187, %v1840
    %v1842 = vand.u32 2147483647, %v1841
    %v1844 = vcvt.s32.f32 %v1837
    %v1845 = vmul.f32 %v1844, %v1842
    %v1846 = vxor.u32 %v1845, 2147483648
    %v1847 = vsel %vm1726, %v1846, %v1845
    %v1848 = vsub.s32 4, %v1824
    %v1849 = vsel %vm1726, %v1848, %v1824
    %v1850 = vsel %vm1725, %v1723, %v1847
    %v1851 = vsel %vm1725, 0, %v1849
    %v1852 = vmul.f32 %v1850, %v1850
    %v1853 = vmul.f32 %v1852, -0.001358992
    %v1854 = vadd.f32 %v1853, 0.041655596
    %v1855 = vmul.f32 %v1852, %v1854
    %v1856 = vadd.f32 %v1855, -0.4999988
    %v1857 = vmul.f32 %v1852, %v1856
    %v1858 = vadd.f32 1.0, %v1857
    %v1859 = vmul.f32 %v1850, %v1850
    %v1860 = vmul.f32 %v1859, -0.00019511016
    %v1861 = vadd.f32 %v1860, 0.008332121
    %v1862 = vmul.f32 %v1859, %v1861
    %v1863 = vadd.f32 %v1862, -0.16666654
    %v1864 = vmul.f32 %v1859, %v1863
    %v1865 = vadd.f32 %v1864, 1.0
    %v1866 = vmul.f32 %v1865, %v1850
    %vm1867 = vweird.f32 %v1723
    %v1868 = vand.u32 %v1851, 3
    %vm1869 = vcmp.lt.s32.totalorder %v1868, 2
    %vm1870 = vcmp.eq.s32.totalorder %v1868, 0
    %v1871 = vxor.u32 %v1866, 2147483648
    %v1872 = vsel %vm1870, %v1858, %v1871
    %vm1873 = vcmp.eq.s32.totalorder %v1868, 2
    %v1874 = vxor.u32 %v1858, 2147483648
    %v1875 = vsel %vm1873, %v1874, %v1866
    %v1876 = vsel %vm1869, %v1872, %v1875
    %v1877 = vsel %vm1867, nan, %v1876
    %v1878 = vmul.f32 %v1721, %v1877
    %v1879 = vmul.f32 %v1878, %v450
    %s1880 = scalar_lea.vmem [#allocation14], 56
    %1881 = vst [vmem:[%s1880] sm:$0xff] %v1879
    %s1882 = sld [smem:[#allocation2 + $0x8]]
    %s1883 = sld [smem:[#allocation6 + $0x8]]
    %v1884 = vstv %s1882
    %v1885 = vmul.f32 %v1884, %v261
    %v1886 = vstv %s1883
    %v1887 = vmul.f32 %v1886, %v416
    %v1888 = vadd.f32 %v1885, %v1887
    %s1889 = ssub.f32 0.0, %s1882
    %v1890 = vstv %s1889
    %v1891 = vmul.f32 %v1890, %v416
    %v1892 = vmul.f32 %v1886, %v261
    %v1893 = vadd.f32 %v1891, %v1892
    %v1894 = vmul.f32 %v1888, %v1888
    %v1895 = vmul.f32 %v1893, %v1893
    %v1896 = vadd.f32 %v1894, %v1895
    %v1897 = vmul.f32 %v1896, -0.5
    %v1898 = vmul.f32 %v1897, %v433
    %v1899 = vmul.f32 %v1898, 1.442695
    %v1900 = vpow.pop %v1899
    %v1901 = vmul.f32 %v104, %v1888
    %v1902 = vadd.f32 %v1901, %v107
    %v1903 = vand.u32 2147483647, %v1902
    %vm1904 = vcmp.le.f32.partialorder %v1903, 0.7853982
    %vm1905 = vcmp.lt.s32.totalorder %v1902, 0
    %v1906 = vand.u32 %v1902, 2139095040
    %v1907 = vshrl.u32 %v1906, 23
    %v1908 = vsub.s32 %v1907, 127
    %v1909 = vand.u32 2147483647, %v1902
    %v1910 = vand.u32 %v1909, 8388607
    %v1911 = vor.u32 %v1910, 8388608
    %v1912 = vsub.s32 0, %v1911
    %v1913 = vadd.s32 %v1908, 1
    %vm1914 = vcmp.gt.s32.totalorder %v1913, 0
    %v1915 = vsel %vm1914, %v1913, 0
    %v1916 = vshrl.u32 %v1915, 5
    %v1917 = vand.u32 %v1915, 31
    %v1918 = vsub.s32 32, %v1917
    %v1919 = vshrl.u32 683565275, %v1918
    %v1920 = vshll.u32 683565275, %v1917
    %v1921 = vshrl.u32 2475754826, %v1918
    %v1922 = vor.u32 %v1920, %v1921
    %v1923 = vshll.u32 2475754826, %v1917
    %v1924 = vshrl.u32 2131351028, %v1918
    %v1925 = vor.u32 %v1923, %v1924
    %v1926 = vshll.u32 2131351028, %v1917
    %v1927 = vshrl.u32 2102212464, %v1918
    %v1928 = vor.u32 %v1926, %v1927
    %v1929 = vshll.u32 2102212464, %v1917
    %v1930 = vshrl.u32 920167782, %v1918
    %v1931 = vor.u32 %v1929, %v1930
    %v1932 = vshll.u32 920167782, %v1917
    %v1933 = vshrl.u32 1326507024, %v1918
    %v1934 = vor.u32 %v1932, %v1933
    %vm1935 = vcmp.lt.s32.totalorder %v1916, 1
    %vm1936 = vcmp.lt.s32.totalorder %v1916, 2
    %vm1937 = vcmp.lt.s32.totalorder %v1916, 3
    %vm1938 = vcmp.lt.s32.totalorder %v1916, 4
    %v1939 = vsel %vm1935, %v1919, %v1922
    %v1940 = vsel %vm1938, %v1928, 2102212464
    %v1941 = vsel %vm1937, %v1925, %v1940
    %v1942 = vsel %vm1936, %v1939, %v1941
    %v1943 = vsel %vm1935, %v1922, %v1925
    %v1944 = vsel %vm1938, %v1931, 920167782
    %v1945 = vsel %vm1937, %v1928, %v1944
    %v1946 = vsel %vm1936, %v1943, %v1945
    %v1947 = vsel %vm1935, %v1925, %v1928
    %v1948 = vsel %vm1938, %v1934, 1326507024
    %v1949 = vsel %vm1937, %v1931, %v1948
    %v1950 = vsel %vm1936, %v1947, %v1949
    %v1951 = vshll.u32 %v1911, 8
    %v1952 = vand.u32 %v1951, 65535
    %v1953 = vshrl.u32 %v1951, 16
    %v1954 = vand.u32 %v1950, 65535
    %v1955 = vshrl.u32 %v1950, 16
    %v1956 = vmul.u32 %v1952, %v1954
    %v1957 = vmul.u32 %v1952, %v1955
    %v1958 = vmul.u32 %v1953, %v1954
    %v1959 = vmul.u32 %v1953, %v1955
    %v1960 = vshll.u32 %v1957, 16
    %v1961 = vshrl.u32 %v1957, 16
    %v1962 = vshll.u32 %v1958, 16
    %v1963 = vshrl.u32 %v1958, 16
    %vm1964 = vc.u32 %v1956, %v1960
    %v1965 = vsel %vm1964, 1, 0
    %v1966 = vadd.s32 %v1956, %v1960
    %v1967 = vadd.s32 %v1959, %v1965
    %vm1968 = vc.u32 %v1966, %v1962
    %v1969 = vsel %vm1968, 1, 0
    %v1970 = vadd.s32 %v1966, %v1962
    %v1971 = vadd.s32 %v1967, %v1969
    %v1972 = vadd.s32 %v1971, %v1961
    %v1973 = vadd.s32 %v1972, %v1963
    %v1974 = vand.u32 %v1951, 65535
    %v1975 = vshrl.u32 %v1951, 16
    %v1976 = vand.u32 %v1946, 65535
    %v1977 = vshrl.u32 %v1946, 16
    %v1978 = vmul.u32 %v1974, %v1976
    %v1979 = vmul.u32 %v1974, %v1977
    %v1980 = vmul.u32 %v1975, %v1976
    %v1981 = vmul.u32 %v1975, %v1977
    %v1982 = vshll.u32 %v1979, 16
    %v1983 = vshrl.u32 %v1979, 16
    %v1984 = vshll.u32 %v1980, 16
    %v1985 = vshrl.u32 %v1980, 16
    %vm1986 = vc.u32 %v1978, %v1982
    %v1987 = vsel %vm1986, 1, 0
    %v1988 = vadd.s32 %v1978, %v1982
    %v1989 = vadd.s32 %v1981, %v1987
    %vm1990 = vc.u32 %v1988, %v1984
    %v1991 = vsel %vm1990, 1, 0
    %v1992 = vadd.s32 %v1988, %v1984
    %v1993 = vadd.s32 %v1989, %v1991
    %v1994 = vadd.s32 %v1993, %v1983
    %v1995 = vadd.s32 %v1994, %v1985
    %v1996 = vmul.u32 %v1951, %v1942
    %v1997 = vadd.s32 %v1973, %v1992
    %vm1998 = vc.u32 %v1973, %v1992
    %v1999 = vadd.s32 %v1995, 1
    %v2000 = vsel %vm1998, %v1999, %v1995
    %v2001 = vadd.s32 %v1996, %v2000
    %v2002 = vadd.s32 %v2001, 536870912
    %v2003 = vshrl.u32 %v2002, 30
    %v2004 = vshll.u32 %v2003, 30
    %v2005 = vsub.s32 %v2001, %v2004
    %vm2006 = vcmp.lt.s32.totalorder %v2005, 0
    %v2007 = vsub.s32 0, %v2005
    %v2008 = vsel %vm2006, %v2007, %v2005
    %v2009 = vclz %v2008
    %v2010 = vsub.s32 %v2009, 2
    %vm2011 = vcmp.gt.s32.totalorder 0, %v2010
    %v2012 = vsel %vm2011, 0, %v2010
    %v2013 = vsub.s32 32, %v2012
    %v2014 = vshll.u32 %v2005, %v2012
    %v2015 = vshrl.u32 %v1997, %v2013
    %v2016 = vor.u32 %v2014, %v2015
    %v2017 = vsub.s32 4294967266, %v2012
    %v2018 = vadd.s32 %v2017, 127
    %v2019 = vshll.u32 %v2018, 23
    %v2020 = vor.u32 4788187, %v2019
    %v2021 = vand.u32 2147483647, %v2020
    %v2023 = vcvt.s32.f32 %v2016
    %v2024 = vmul.f32 %v2023, %v2021
    %v2025 = vxor.u32 %v2024, 2147483648
    %v2026 = vsel %vm1905, %v2025, %v2024
    %v2027 = vsub.s32 4, %v2003
    %v2028 = vsel %vm1905, %v2027, %v2003
    %v2029 = vsel %vm1904, %v1902, %v2026
    %v2030 = vsel %vm1904, 0, %v2028
    %v2031 = vmul.f32 %v2029, %v2029
    %v2032 = vmul.f32 %v2031, -0.001358992
    %v2033 = vadd.f32 %v2032, 0.041655596
    %v2034 = vmul.f32 %v2031, %v2033
    %v2035 = vadd.f32 %v2034, -0.4999988
    %v2036 = vmul.f32 %v2031, %v2035
    %v2037 = vadd.f32 1.0, %v2036
    %v2038 = vmul.f32 %v2029, %v2029
    %v2039 = vmul.f32 %v2038, -0.00019511016
    %v2040 = vadd.f32 %v2039, 0.008332121
    %v2041 = vmul.f32 %v2038, %v2040
    %v2042 = vadd.f32 %v2041, -0.16666654
    %v2043 = vmul.f32 %v2038, %v2042
    %v2044 = vadd.f32 %v2043, 1.0
    %v2045 = vmul.f32 %v2044, %v2029
    %vm2046 = vweird.f32 %v1902
    %v2047 = vand.u32 %v2030, 3
    %vm2048 = vcmp.lt.s32.totalorder %v2047, 2
    %vm2049 = vcmp.eq.s32.totalorder %v2047, 0
    %v2050 = vxor.u32 %v2045, 2147483648
    %v2051 = vsel %vm2049, %v2037, %v2050
    %vm2052 = vcmp.eq.s32.totalorder %v2047, 2
    %v2053 = vxor.u32 %v2037, 2147483648
    %v2054 = vsel %vm2052, %v2053, %v2045
    %v2055 = vsel %vm2048, %v2051, %v2054
    %v2056 = vsel %vm2046, nan, %v2055
    %v2057 = vmul.f32 %v1900, %v2056
    %v2058 = vmul.f32 %v2057, %v450
    %s2059 = scalar_lea.vmem [#allocation14], 64
    %2060 = vst [vmem:[%s2059] sm:$0xff] %v2058
    // Predicated region
    $region50: #{tpu_custom_call.1} parent=1 // pred_check
      _
    $region51: #{tpu_custom_call.1} parent=1 // pred_check_branch
      %2062 = sbr.rel (0) target = $region53
    $region52: #{tpu_custom_call.1} parent=1 // pred_region
      %2064 = vsyncadd [#allocation4], 0
      %s2065 = sshll.u32 [#allocation14], 4
      %s2066 = int_to_ptr.vmem [resolvable:$true] %s2065
      %s2067 = sshll.u32 %s6, 4
      %s2068 = int_to_ptr.hbm [resolvable:$true] %s2067
      %2073 = dma.vmem_to_hbm [thread:$0]  %s2066, 1152, %s2068, [#allocation4], 128, 128, 8
    $region53: #{tpu_custom_call.1} parent=1 // pred_fallthru
      _
    // Predicated region
    $region54: #{tpu_custom_call.1} parent=1 // pred_check
      _
    $region55: #{tpu_custom_call.1} parent=1 // pred_check_branch
      %2075 = sbr.rel (0) target = $region57
    $region56: #{tpu_custom_call.1} parent=1 // pred_region
      %2077 = dma.done [#allocation4], 1152
    $region57: #{tpu_custom_call.1} parent=1 // pred_fallthru
      _
    %2078 = vsyncpa [#allocation3], 1
    %2079 = vsyncpa [#allocation10], 1
    %2080 = vsyncpa [#allocation13], 1
    %2081 = vsyncpa [#allocation4], 1
    %2082 = vsyncpa [#allocation5], 1
    %2083 = vsyncpa [#allocation7], 1

</llo_original>
